<compile_context>
chip_gen: v5e
topology: v5e:2x2
jax: 0.10.0
libtpu: 0.0.40
codegen_flags: <defaults>
</compile_context>

<pallas_src>
from functools import partial

import numpy as np
import jax
import jax.numpy as jnp
from jax import lax
from jax.experimental import pallas as pl
from jax.experimental.pallas import tpu as pltpu

N_QUBITS = 3
N_FUZZY_MEM = 2
N_COMBO = N_FUZZY_MEM ** N_QUBITS          # 8
DEFUZZ_LAYERS = 2


# ----------------------------------------------------------------------------
# Kernel 1: Linear(10,3) + GroupNorm(1,3) + fuzzy Gaussians + quantum T-norm.
#           (10, TB) -> (8, TB) tnorm + (1, 8, 2) masked partial BN statistics.
#           Batch on lanes.
# ----------------------------------------------------------------------------
def tnorm_kernel(x_ref, w1_ref, v_ref, t_ref, stats_ref, *, batch, block_b):
    x = x_ref[...]                                            # (10, TB)
    b1   = v_ref[:, 0:1]                                      # (3, 1)
    m0   = v_ref[:, 1:2]                                      # GroupNorm affine already folded in
    m1   = v_ref[:, 2:3]
    inv0 = v_ref[:, 3:4]                                      # gnw^2 / (2*theta^2)
    inv1 = v_ref[:, 4:5]

    # nn.Linear(10, 3): batch sits on the MXU's wide N edge.
    h = jnp.dot(w1_ref[...], x, preferred_element_type=jnp.float32) + b1      # (3, TB)

    # nn.GroupNorm(1, 3): per-sample stats over the 3 channels (sublane axis).
    mu = jnp.mean(h, axis=0, keepdims=True)
    var = jnp.mean((h - mu) ** 2, axis=0, keepdims=True)
    n = (h - mu) * lax.rsqrt(var + 1e-5)                                       # (3, TB)

    # Fuzzy Gaussian memberships for the two fuzzy memories, clamped like the module.
    p0 = jnp.clip(jnp.exp(-(n - m0) ** 2 * inv0) + 1e-16, 0.0, 0.99999)
    p1 = jnp.clip(jnp.exp(-(n - m1) ** 2 * inv1) + 1e-16, 0.0, 0.99999)
    d01 = p1 - p0                                                              # (3, TB)

    # Quantum T-norm: combo i (row) -> <Z_anc> = 1 - 2 * prod_j p_{bit_j(i), j},
    # bit_j(i) = (i >> (2 - j)) & 1  (MSB-first, matches format(i, '03b')[j]).
    row = lax.broadcasted_iota(jnp.int32, (N_COMBO, 1), 0)                     # (8, 1)
    prod = None
    for j in range(N_QUBITS):
        bit = ((row >> (N_QUBITS - 1 - j)) & 1).astype(jnp.float32)            # (8, 1)
        sel = p0[j:j + 1, :] + bit * d01[j:j + 1, :]                           # (8, TB)
        prod = sel if prod is None else prod * sel
    t = 1.0 - 2.0 * prod                                                       # (8, TB)
    t_ref[...] = t

    # Per-tile BatchNorm partial statistics over the valid lanes of this tile.
    # (Rides on idle VPU/XLU slots; padded lanes of the last tile are masked out so the
    #  global batch statistics stay exact for any B.)
    lane = lax.broadcasted_iota(jnp.int32, (1, block_b), 1)                    # (1, TB)
    valid = (pl.program_id(0) * block_b + lane) < batch                        # (1, TB)
    tm = jnp.where(valid, t, 0.0)
    sums = jnp.sum(tm, axis=1, keepdims=True)                                  # (8, 1)
    sqs = jnp.sum(tm * tm, axis=1, keepdims=True)                              # (8, 1)
    stats_ref[0] = jnp.concatenate([sums, sqs], axis=1)                        # (8, 2)


# ----------------------------------------------------------------------------
# Kernel 2: (BatchNorm-folded) Linear(8,3) + defuzz circuit + softmax_linear
#           (with the Z-sign contraction folded into the weight).
#           (8, TB) -> (10, TB), batch on lanes.
# ----------------------------------------------------------------------------
def defuzz_kernel(t_ref, wc_ref, ucat_ref, wf_ref, v_ref, o_ref):
    t = t_ref[...]                                            # (8, TB)
    bc = v_ref[0:N_QUBITS, :]                                 # (3, 1)  BN-folded Linear(8,3) bias
    bs = v_ref[8:18, :]                                       # (10, 1) softmax_linear bias

    z = jnp.dot(wc_ref[...], t, preferred_element_type=jnp.float32) + bc      # (3, TB)

    # RY encoding: psi0_k = prod_j (cos(z_j/2) if bit_j(k)==0 else sin(z_j/2)), little-endian.
    half = 0.5 * z
    c = jnp.cos(half)
    sc = jnp.sin(half) - c                                                     # selection delta
    row = lax.broadcasted_iota(jnp.int32, (N_COMBO, 1), 0)                     # (8, 1)
    psi = None
    for j in range(N_QUBITS):
        bit = ((row >> j) & 1).astype(jnp.float32)                             # (8, 1)
        amp = c[j:j + 1, :] + bit * sc[j:j + 1, :]                             # (8, TB)
        psi = amp if psi is None else psi * amp

    # Fixed circuit unitary applied as one real matmul: [Re(U); Im(U)] @ psi.
    cat = jnp.dot(ucat_ref[...], psi, preferred_element_type=jnp.float32)      # (16, TB)
    re = cat[0:N_COMBO, :]
    im = cat[N_COMBO:2 * N_COMBO, :]
    probs = re * re + im * im                                                  # (8, TB)

    # <Z> observables + softmax_linear folded on host: out = (Ws @ zsign^T) @ probs + bs.
    o_ref[...] = (jnp.dot(wf_ref[...], probs,
                          preferred_element_type=jnp.float32) + bs).astype(o_ref.dtype)


# ----------------------------------------------------------------------------
# Host-side helpers: exact 8x8 defuzz unitary and parameter folds.
# ----------------------------------------------------------------------------
def _rx(t):
    c, s = np.cos(t / 2.0), np.sin(t / 2.0)
    return np.array([[c, -1j * s], [-1j * s, c]], dtype=np.complex128)


def _rz(t):
    return np.array([[np.exp(-1j * t / 2.0), 0.0],
                     [0.0, np.exp(1j * t / 2.0)]], dtype=np.complex128)


def _cx(control, target, n=N_QUBITS):
    dim = 2 ** n
    M = np.zeros((dim, dim), dtype=np.complex128)
    for k in range(dim):
        k2 = k ^ (1 << target) if (k >> control) & 1 else k
        M[k2, k] = 1.0
    return M


def build_defuzz_unitary(weights):
    """2 layers of [CX(0,1), CX(1,2), CX(2,0); per-qubit RX,RZ,RX] (Qiskit little-endian)."""
    w = np.asarray(weights, dtype=np.float64)
    U = np.eye(N_COMBO, dtype=np.complex128)
    idx = 0
    for _ in range(DEFUZZ_LAYERS):
        for (ctl, tgt) in [(0, 1), (1, 2), (2, 0)]:
            U = _cx(ctl, tgt) @ U
        rots = []
        for _q in range(N_QUBITS):
            w1, w2, w3 = w[idx], w[idx + 1], w[idx + 2]
            idx += 3
            rots.append(_rx(w3) @ _rz(w2) @ _rx(w1))
        R = np.kron(rots[2], np.kron(rots[1], rots[0]))
        U = R @ U
    return U


def make_params(key):
    """Deterministic stand-ins for the module's parameters.

    Returns (kernel_params, raw_params): kernel_params holds the pre-folded arrays the
    Pallas kernels consume; raw_params holds module-style params for the pure-JAX reference.
    """
    f32 = jnp.float32
    ks = jax.random.split(key, 7)

    W1 = jax.random.normal(ks[0], (N_QUBITS, 10), f32) * 0.3          # linear (xavier-ish)
    b1 = jnp.full((N_QUBITS,), 0.01, f32)                             # _weights_init bias fill
    gnw = jnp.ones((N_QUBITS,), f32)                                  # GroupNorm affine defaults
    gnb = jnp.zeros((N_QUBITS,), f32)
    m = jax.random.normal(ks[1], (N_QUBITS, N_FUZZY_MEM), f32)        # nn.Parameter(randn)
    theta = jax.random.normal(ks[2], (N_QUBITS, N_FUZZY_MEM), f32)
    bn_gamma = jnp.ones((N_COMBO,), f32)                              # BatchNorm1d defaults
    bn_beta = jnp.zeros((N_COMBO,), f32)
    # TODO(synk): the module builds a *fresh* randomly-initialised nn.Linear(8,3) inside
    # forward(); a fixed deterministic (Wc, bc) is used here instead.
    Wc = jax.random.normal(ks[3], (N_QUBITS, N_COMBO), f32) * 0.3
    bc = jax.random.uniform(ks[4], (N_QUBITS,), f32, -0.3, 0.3)
    defuzz_w = jax.random.uniform(ks[5], (DEFUZZ_LAYERS * 3 * N_QUBITS,), f32, -1.0, 1.0)
    Ws = jax.random.normal(ks[6], (10, N_QUBITS), f32) * 0.4          # softmax_linear
    bs = jnp.full((10,), 0.01, f32)

    U = build_defuzz_unitary(np.asarray(defuzz_w))                    # (8, 8) complex

    # Z-sign matrix: observable j is Z on qubit (2 - j)  ('ZII', 'IZI', 'IIZ').
    zsign_np = np.zeros((N_COMBO, N_QUBITS), np.float32)
    for k in range(N_COMBO):
        for j in range(N_QUBITS):
            zsign_np[k, j] = 1.0 if ((k >> (N_QUBITS - 1 - j)) & 1) == 0 else -1.0
    zsign = jnp.asarray(zsign_np)

    # --- host-side folds for the kernels ---
    # GroupNorm affine folded into the fuzzy Gaussians (valid since gnw != 0).
    m0p = (m[:, 0] - gnb) / gnw
    m1p = (m[:, 1] - gnb) / gnw
    inv0 = gnw ** 2 / (2.0 * theta[:, 0] ** 2)
    inv1 = gnw ** 2 / (2.0 * theta[:, 1] ** 2)
    vecs1 = jnp.zeros((N_QUBITS, 8), f32)
    vecs1 = (vecs1.at[:, 0].set(b1).at[:, 1].set(m0p).at[:, 2].set(m1p)
                  .at[:, 3].set(inv0).at[:, 4].set(inv1))

    kernel_params = {
        "w1": W1,
        "vecs1": vecs1,
        "bn_gamma": bn_gamma,
        "bn_beta": bn_beta,
        "wc": Wc,
        "bc": bc,
        "bs": bs,
        "ucat": jnp.concatenate([jnp.asarray(U.real, f32), jnp.asarray(U.imag, f32)], axis=0),
        "wfold": Ws @ zsign.T,                                        # (10, 8)
    }
    raw_params = {
        "W1": W1, "b1": b1, "gnw": gnw, "gnb": gnb, "m": m, "theta": theta,
        "bn_gamma": bn_gamma, "bn_beta": bn_beta, "Wc": Wc, "bc": bc,
        "U": U, "zsign": zsign, "Ws": Ws, "bs": bs,
    }
    return kernel_params, raw_params


# ----------------------------------------------------------------------------
# Forward wrapper: two parallel-batch pallas_calls + tiny global-BN fold between them.
# ----------------------------------------------------------------------------
@partial(jax.jit, static_argnames=("block_b",))
def qfnn_forward(x, params, block_b=4096):
    """x: (B, 10) float32 -> (B, 10) logits.

    block_b = batch lanes per grid step (multiple of 128).  Large values (4K-32K) amortise
    the per-grid-step overhead; it is automatically shrunk for small batches.  On v7x keep
    block_b small enough that the grid has >= 2 steps so both TensorCores are used.
    """
    assert block_b % 128 == 0
    B = x.shape[0]
    # Effective tile: no larger than the (128-rounded) batch -> no gratuitous padding work.
    bb = max(128, min(block_b, 128 * (-(-B // 128))))
    nt = -(-B // bb)
    Bp = nt * bb

    # Layout plumbing outside the kernels: batch onto the lane axis, pad to the tile size.
    # TODO(synk): if the surrounding model can carry a (feature, batch) layout, drop this
    # transpose and the final one (each is a full HBM round trip).
    xT = jnp.pad(x.astype(jnp.float32).T, ((0, 0), (0, Bp - B)))      # (10, Bp)

    const = lambda i: (0, 0)   # constant index_map -> weights stay VMEM-resident across steps
    cparams = pltpu.CompilerParams(dimension_semantics=("parallel",),
                                   vmem_limit_bytes=48 * 1024 * 1024)

    tnorm, stats = pl.pallas_call(
        partial(tnorm_kernel, batch=B, block_b=bb),
        out_shape=(jax.ShapeDtypeStruct((N_COMBO, Bp), jnp.float32),
                   jax.ShapeDtypeStruct((nt, N_COMBO, 2), jnp.float32)),
        grid=(nt,),
        in_specs=[
            pl.BlockSpec((10, bb), lambda i: (0, i)),
            pl.BlockSpec((N_QUBITS, 10), const),
            pl.BlockSpec((N_QUBITS, 8), const),
        ],
        out_specs=(pl.BlockSpec((N_COMBO, bb), lambda i: (0, i)),
                   pl.BlockSpec((1, N_COMBO, 2), lambda i: (i, 0, 0))),
        compiler_params=cparams,
    )(xT, params["w1"], params["vecs1"])

    # nn.BatchNorm1d(8), training mode: GLOBAL batch statistics assembled from the masked
    # per-tile partial sums (no HBM re-read of the tnorm intermediate), folded into the
    # fresh Linear(8,3) so kernel 2 never sees BN.
    s = jnp.sum(stats[:, :, 0], axis=0)                       # (8,)
    ss = jnp.sum(stats[:, :, 1], axis=0)                      # (8,)
    mu = s / B
    var = jnp.maximum(ss / B - mu * mu, 0.0)                  # biased, like PyTorch BN normalization
    a = params["bn_gamma"] * lax.rsqrt(var + 1e-5)
    d = params["bn_beta"] - mu * a
    wc_eff = params["wc"] * a[None, :]                        # (3, 8)
    bc_eff = params["bc"] + params["wc"] @ d                  # (3,)
    vecs2 = jnp.zeros((24, 1), jnp.float32)
    vecs2 = vecs2.at[0:3, 0].set(bc_eff).at[8:18, 0].set(params["bs"])

    outT = pl.pallas_call(
        defuzz_kernel,
        out_shape=jax.ShapeDtypeStruct((10, Bp), jnp.float32),
        grid=(nt,),
        in_specs=[
            pl.BlockSpec((N_COMBO, bb), lambda i: (0, i)),
            pl.BlockSpec((N_QUBITS, 8), const),
            pl.BlockSpec((2 * N_COMBO, 8), const),
            pl.BlockSpec((10, 8), const),
            pl.BlockSpec((24, 1), const),
        ],
        out_specs=pl.BlockSpec((10, bb), lambda i: (0, i)),
        compiler_params=cparams,
    )(tnorm, wc_eff, params["ucat"], params["wfold"], vecs2)

    return outT[:, :B].T                                      # (B, 10)


# ----------------------------------------------------------------------------
# Pure-JAX reference (module-style, batch-major) for validation.
# ----------------------------------------------------------------------------
def qfnn_reference(x, raw):
    h = x @ raw["W1"].T + raw["b1"]
    mu = jnp.mean(h, axis=1, keepdims=True)
    var = jnp.mean((h - mu) ** 2, axis=1, keepdims=True)
    g = (h - mu) / jnp.sqrt(var + 1e-5) * raw["gnw"] + raw["gnb"]
    p0 = jnp.clip(jnp.exp(-(g - raw["m"][:, 0]) ** 2 / (2.0 * raw["theta"][:, 0] ** 2)) + 1e-16,
                  0.0, 0.99999)
    p1 = jnp.clip(jnp.exp(-(g - raw["m"][:, 1]) ** 2 / (2.0 * raw["theta"][:, 1] ** 2)) + 1e-16,
                  0.0, 0.99999)
    cols = []
    for i in range(N_COMBO):
        prod = jnp.ones_like(p0[:, 0])
        for j in range(N_QUBITS):
            prod = prod * (p1[:, j] if (i >> (N_QUBITS - 1 - j)) & 1 else p0[:, j])
        cols.append(1.0 - 2.0 * prod)
    tnorm = jnp.stack(cols, axis=1)                                            # (B, 8)
    bn = ((tnorm - jnp.mean(tnorm, axis=0)) / jnp.sqrt(jnp.var(tnorm, axis=0) + 1e-5)
          * raw["bn_gamma"] + raw["bn_beta"])
    z = bn @ raw["Wc"].T + raw["bc"]                                           # (B, 3)
    c, s = jnp.cos(0.5 * z), jnp.sin(0.5 * z)
    amps = []
    for k in range(N_COMBO):
        a = jnp.ones_like(c[:, 0])
        for j in range(N_QUBITS):
            a = a * (s[:, j] if (k >> j) & 1 else c[:, j])
        amps.append(a)
    psi0 = jnp.stack(amps, axis=1)                                             # (B, 8) real
    re = psi0 @ jnp.asarray(raw["U"].real.T, jnp.float32)
    im = psi0 @ jnp.asarray(raw["U"].imag.T, jnp.float32)
    probs = re * re + im * im
    defuzz = probs @ raw["zsign"]                                              # (B, 3)
    return defuzz @ raw["Ws"].T + raw["bs"]


if __name__ == "__main__":
    key = jax.random.PRNGKey(0)
    k_x, k_p = jax.random.split(key)
    # Small demo: B=300 is not a multiple of the tile -> exercises the 2-tile parallel grid
    # AND the masked partial-BN-statistics path on the padded last tile.
    B = 300
    x = jax.random.normal(k_x, (B, 10), jnp.float32)   # Qfnn input: (batch, 10)
    kernel_params, raw_params = make_params(k_p)

    out = qfnn_forward(x, kernel_params, block_b=256)
    out = jax.block_until_ready(out)
    assert out.shape == (B, 10) and out.dtype == jnp.float32
    assert bool(jnp.all(jnp.isfinite(out)))

    ref = qfnn_reference(x, raw_params)
    err = float(jnp.max(jnp.abs(out - ref)))
    assert err < 2e-3, f"kernel/reference mismatch: max abs err = {err}"
    print("KERNEL_OK")
</pallas_src>

<mosaic_0001>
module attributes {stable_mosaic.version = 11 : i64} {
  func.func @tnorm_kernel(%arg0: i32, %arg1: memref<10x256xf32, #tpu.memory_space<vmem>>, %arg2: memref<3x10xf32, #tpu.memory_space<vmem>>, %arg3: memref<3x8xf32, #tpu.memory_space<vmem>>, %arg4: memref<8x256xf32, #tpu.memory_space<vmem>>, %arg5: memref<1x8x2xf32, #tpu.memory_space<vmem>>) attributes {dimension_semantics = [#tpu.dimension_semantics<parallel>], iteration_bounds = array<i64: 2>, scalar_prefetch = 0 : i64, scratch_operands = 0 : i64, tpu.core_type = #tpu.core_type<tc>, window_params = [{transform_indices = @transform_0, window_bounds = array<i64: 10, 256>}, {pipeline_mode = #tpu.pipeline_mode<synchronous>, transform_indices = @transform_1, window_bounds = array<i64: 3, 10>}, {pipeline_mode = #tpu.pipeline_mode<synchronous>, transform_indices = @transform_2, window_bounds = array<i64: 3, 8>}, {transform_indices = @transform_3, window_bounds = array<i64: 8, 256>}, {transform_indices = @transform_4, window_bounds = array<i64: 1, 8, 2>}]} {
    %c0 = arith.constant 0 : index
    %c0_0 = arith.constant 0 : index
    %0 = vector.load %arg1[%c0, %c0_0] : memref<10x256xf32, #tpu.memory_space<vmem>>, vector<10x256xf32>
    %c0_1 = arith.constant 0 : index
    %c0_2 = arith.constant 0 : index
    %1 = vector.load %arg3[%c0_1, %c0_2] : memref<3x8xf32, #tpu.memory_space<vmem>>, vector<3x1xf32>
    %c0_3 = arith.constant 0 : index
    %c1 = arith.constant 1 : index
    %2 = vector.load %arg3[%c0_3, %c1] : memref<3x8xf32, #tpu.memory_space<vmem>>, vector<3x1xf32>
    %c0_4 = arith.constant 0 : index
    %c2 = arith.constant 2 : index
    %3 = vector.load %arg3[%c0_4, %c2] : memref<3x8xf32, #tpu.memory_space<vmem>>, vector<3x1xf32>
    %c0_5 = arith.constant 0 : index
    %c3 = arith.constant 3 : index
    %4 = vector.load %arg3[%c0_5, %c3] : memref<3x8xf32, #tpu.memory_space<vmem>>, vector<3x1xf32>
    %c0_6 = arith.constant 0 : index
    %c4 = arith.constant 4 : index
    %5 = vector.load %arg3[%c0_6, %c4] : memref<3x8xf32, #tpu.memory_space<vmem>>, vector<3x1xf32>
    %c0_7 = arith.constant 0 : index
    %c0_8 = arith.constant 0 : index
    %6 = vector.load %arg2[%c0_7, %c0_8] : memref<3x10xf32, #tpu.memory_space<vmem>>, vector<3x10xf32>
    %cst = arith.constant dense<0.000000e+00> : vector<3x256xf32>
    %7 = tpu.matmul %6, %0, %cst {dimension_numbers = #tpu.dot_dimension_numbers<[1], [0], [0], [1], [0, 0, 1, 1], [], []>} : vector<3x10xf32>, vector<10x256xf32>, vector<3x256xf32> -> vector<3x256xf32>
    %8 = vector.broadcast %1 : vector<3x1xf32> to vector<3x256xf32>
    %9 = arith.addf %7, %8 : vector<3x256xf32>
    %cst_9 = arith.constant dense<0.000000e+00> : vector<256xf32>
    %10 = vector.multi_reduction <add>, %9, %cst_9 [0] : vector<3x256xf32> to vector<256xf32>
    %11 = vector.shape_cast %10 : vector<256xf32> to vector<1x256xf32>
    %cst_10 = arith.constant 3.000000e+00 : f32
    %12 = vector.broadcast %cst_10 : f32 to vector<1x256xf32>
    %13 = arith.divf %11, %12 : vector<1x256xf32>
    %14 = vector.broadcast %13 : vector<1x256xf32> to vector<3x256xf32>
    %15 = arith.subf %9, %14 : vector<3x256xf32>
    %16 = arith.mulf %15, %15 : vector<3x256xf32>
    %cst_11 = arith.constant dense<0.000000e+00> : vector<256xf32>
    %17 = vector.multi_reduction <add>, %16, %cst_11 [0] : vector<3x256xf32> to vector<256xf32>
    %18 = vector.shape_cast %17 : vector<256xf32> to vector<1x256xf32>
    %cst_12 = arith.constant 3.000000e+00 : f32
    %19 = vector.broadcast %cst_12 : f32 to vector<1x256xf32>
    %20 = arith.divf %18, %19 : vector<1x256xf32>
    %21 = vector.broadcast %13 : vector<1x256xf32> to vector<3x256xf32>
    %22 = arith.subf %9, %21 : vector<3x256xf32>
    %cst_13 = arith.constant 9.99999974E-6 : f32
    %23 = vector.broadcast %cst_13 : f32 to vector<1x256xf32>
    %24 = arith.addf %20, %23 : vector<1x256xf32>
    %25 = math.rsqrt %24 : vector<1x256xf32>
    %26 = vector.broadcast %25 : vector<1x256xf32> to vector<3x256xf32>
    %27 = arith.mulf %22, %26 : vector<3x256xf32>
    %28 = vector.broadcast %2 : vector<3x1xf32> to vector<3x256xf32>
    %29 = arith.subf %27, %28 : vector<3x256xf32>
    %30 = arith.mulf %29, %29 : vector<3x256xf32>
    %cst_14 = arith.constant 0.000000e+00 : f32
    %31 = vector.broadcast %cst_14 : f32 to vector<3x256xf32>
    %32 = arith.subf %31, %30 : vector<3x256xf32>
    %33 = vector.broadcast %4 : vector<3x1xf32> to vector<3x256xf32>
    %34 = arith.mulf %32, %33 : vector<3x256xf32>
    %35 = math.exp %34 : vector<3x256xf32>
    %cst_15 = arith.constant 1.000000e-16 : f32
    %36 = vector.broadcast %cst_15 : f32 to vector<3x256xf32>
    %37 = arith.addf %35, %36 : vector<3x256xf32>
    %cst_16 = arith.constant 0.000000e+00 : f32
    %cst_17 = arith.constant 0.999989986 : f32
    %38 = vector.broadcast %cst_16 : f32 to vector<3x256xf32>
    %39 = arith.maximumf %38, %37 : vector<3x256xf32>
    %40 = vector.broadcast %cst_17 : f32 to vector<3x256xf32>
    %41 = arith.minimumf %40, %39 : vector<3x256xf32>
    %42 = vector.broadcast %3 : vector<3x1xf32> to vector<3x256xf32>
    %43 = arith.subf %27, %42 : vector<3x256xf32>
    %44 = arith.mulf %43, %43 : vector<3x256xf32>
    %cst_18 = arith.constant 0.000000e+00 : f32
    %45 = vector.broadcast %cst_18 : f32 to vector<3x256xf32>
    %46 = arith.subf %45, %44 : vector<3x256xf32>
    %47 = vector.broadcast %5 : vector<3x1xf32> to vector<3x256xf32>
    %48 = arith.mulf %46, %47 : vector<3x256xf32>
    %49 = math.exp %48 : vector<3x256xf32>
    %cst_19 = arith.constant 1.000000e-16 : f32
    %50 = vector.broadcast %cst_19 : f32 to vector<3x256xf32>
    %51 = arith.addf %49, %50 : vector<3x256xf32>
    %cst_20 = arith.constant 0.000000e+00 : f32
    %cst_21 = arith.constant 0.999989986 : f32
    %52 = vector.broadcast %cst_20 : f32 to vector<3x256xf32>
    %53 = arith.maximumf %52, %51 : vector<3x256xf32>
    %54 = vector.broadcast %cst_21 : f32 to vector<3x256xf32>
    %55 = arith.minimumf %54, %53 : vector<3x256xf32>
    %56 = arith.subf %55, %41 : vector<3x256xf32>
    %57 = tpu.iota {dimensions = array<i32: 0>} : vector<8x1xi32>
    %c2_i32 = arith.constant 2 : i32
    %58 = vector.broadcast %c2_i32 : i32 to vector<8x1xi32>
    %59 = arith.shrsi %57, %58 : vector<8x1xi32>
    %c1_i32 = arith.constant 1 : i32
    %60 = vector.broadcast %c1_i32 : i32 to vector<8x1xi32>
    %61 = arith.andi %59, %60 : vector<8x1xi32>
    %62 = arith.sitofp %61 : vector<8x1xi32> to vector<8x1xf32>
    %63 = vector.extract_strided_slice %41 {offsets = [0, 0], sizes = [1, 256], strides = [1, 1]} : vector<3x256xf32> to vector<1x256xf32>
    %64 = vector.extract_strided_slice %56 {offsets = [0, 0], sizes = [1, 256], strides = [1, 1]} : vector<3x256xf32> to vector<1x256xf32>
    %65 = vector.broadcast %62 : vector<8x1xf32> to vector<8x256xf32>
    %66 = vector.broadcast %64 : vector<1x256xf32> to vector<8x256xf32>
    %67 = arith.mulf %65, %66 : vector<8x256xf32>
    %68 = vector.broadcast %63 : vector<1x256xf32> to vector<8x256xf32>
    %69 = arith.addf %68, %67 : vector<8x256xf32>
    %c1_i32_22 = arith.constant 1 : i32
    %70 = vector.broadcast %c1_i32_22 : i32 to vector<8x1xi32>
    %71 = arith.shrsi %57, %70 : vector<8x1xi32>
    %c1_i32_23 = arith.constant 1 : i32
    %72 = vector.broadcast %c1_i32_23 : i32 to vector<8x1xi32>
    %73 = arith.andi %71, %72 : vector<8x1xi32>
    %74 = arith.sitofp %73 : vector<8x1xi32> to vector<8x1xf32>
    %75 = vector.extract_strided_slice %41 {offsets = [1, 0], sizes = [1, 256], strides = [1, 1]} : vector<3x256xf32> to vector<1x256xf32>
    %76 = vector.extract_strided_slice %56 {offsets = [1, 0], sizes = [1, 256], strides = [1, 1]} : vector<3x256xf32> to vector<1x256xf32>
    %77 = vector.broadcast %74 : vector<8x1xf32> to vector<8x256xf32>
    %78 = vector.broadcast %76 : vector<1x256xf32> to vector<8x256xf32>
    %79 = arith.mulf %77, %78 : vector<8x256xf32>
    %80 = vector.broadcast %75 : vector<1x256xf32> to vector<8x256xf32>
    %81 = arith.addf %80, %79 : vector<8x256xf32>
    %82 = arith.mulf %69, %81 : vector<8x256xf32>
    %c0_i32 = arith.constant 0 : i32
    %83 = vector.broadcast %c0_i32 : i32 to vector<8x1xi32>
    %84 = arith.shrsi %57, %83 : vector<8x1xi32>
    %c1_i32_24 = arith.constant 1 : i32
    %85 = vector.broadcast %c1_i32_24 : i32 to vector<8x1xi32>
    %86 = arith.andi %84, %85 : vector<8x1xi32>
    %87 = arith.sitofp %86 : vector<8x1xi32> to vector<8x1xf32>
    %88 = vector.extract_strided_slice %41 {offsets = [2, 0], sizes = [1, 256], strides = [1, 1]} : vector<3x256xf32> to vector<1x256xf32>
    %89 = vector.extract_strided_slice %56 {offsets = [2, 0], sizes = [1, 256], strides = [1, 1]} : vector<3x256xf32> to vector<1x256xf32>
    %90 = vector.broadcast %87 : vector<8x1xf32> to vector<8x256xf32>
    %91 = vector.broadcast %89 : vector<1x256xf32> to vector<8x256xf32>
    %92 = arith.mulf %90, %91 : vector<8x256xf32>
    %93 = vector.broadcast %88 : vector<1x256xf32> to vector<8x256xf32>
    %94 = arith.addf %93, %92 : vector<8x256xf32>
    %95 = arith.mulf %82, %94 : vector<8x256xf32>
    %cst_25 = arith.constant 2.000000e+00 : f32
    %96 = vector.broadcast %cst_25 : f32 to vector<8x256xf32>
    %97 = arith.mulf %96, %95 : vector<8x256xf32>
    %cst_26 = arith.constant 1.000000e+00 : f32
    %98 = vector.broadcast %cst_26 : f32 to vector<8x256xf32>
    %99 = arith.subf %98, %97 : vector<8x256xf32>
    %c0_27 = arith.constant 0 : index
    %c0_28 = arith.constant 0 : index
    %100 = vector.load %arg4[%c0_27, %c0_28] : memref<8x256xf32, #tpu.memory_space<vmem>>, vector<8x256xf32>
    tpu.vector_store %arg4[%c0_27, %c0_28], %99 {strides = array<i32>} : memref<8x256xf32, #tpu.memory_space<vmem>>, vector<8x256xf32>,
    %101 = tpu.iota {dimensions = array<i32: 1>} : vector<1x256xi32>
    %c256_i32 = arith.constant 256 : i32
    %102 = arith.muli %arg0, %c256_i32 : i32
    %103 = vector.broadcast %102 : i32 to vector<1x256xi32>
    %104 = arith.addi %103, %101 : vector<1x256xi32>
    %c300_i32 = arith.constant 300 : i32
    %105 = vector.broadcast %c300_i32 : i32 to vector<1x256xi32>
    %106 = arith.cmpi slt, %104, %105 : vector<1x256xi32>
    %cst_29 = arith.constant 0.000000e+00 : f32
    %107 = vector.shape_cast %106 : vector<1x256xi1> to vector<1x256xi1>
    %108 = vector.broadcast %107 : vector<1x256xi1> to vector<8x256xi1>
    %109 = vector.broadcast %cst_29 : f32 to vector<8x256xf32>
    %110 = arith.select %108, %99, %109 : vector<8x256xi1>, vector<8x256xf32>
    %cst_30 = arith.constant dense<0.000000e+00> : vector<8xf32>
    %111 = vector.multi_reduction <add>, %110, %cst_30 [1] : vector<8x256xf32> to vector<8xf32>
    %112 = vector.shape_cast %111 : vector<8xf32> to vector<8x1xf32>
    %113 = arith.mulf %110, %110 : vector<8x256xf32>
    %cst_31 = arith.constant dense<0.000000e+00> : vector<8xf32>
    %114 = vector.multi_reduction <add>, %113, %cst_31 [1] : vector<8x256xf32> to vector<8xf32>
    %115 = vector.shape_cast %114 : vector<8xf32> to vector<8x1xf32>
    %116 = tpu.concatenate %112, %115 in 1 : vector<8x1xf32>, vector<8x1xf32> -> vector<8x2xf32>
    %c0_32 = arith.constant 0 : index
    %c0_33 = arith.constant 0 : index
    %c0_34 = arith.constant 0 : index
    %117 = vector.load %arg5[%c0_32, %c0_33, %c0_34] : memref<1x8x2xf32, #tpu.memory_space<vmem>>, vector<1x8x2xf32>
    %118 = vector.shape_cast %117 : vector<1x8x2xf32> to vector<8x2xf32>
    %119 = vector.shape_cast %116 : vector<8x2xf32> to vector<1x8x2xf32>
    tpu.vector_store %arg5[%c0_32, %c0_33, %c0_34], %119 {strides = array<i32>} : memref<1x8x2xf32, #tpu.memory_space<vmem>>, vector<1x8x2xf32>,
    return
  }
  func.func @transform_0(%arg0: i32) -> (i32, i32) {
    %c0_i32 = arith.constant 0 : i32
    %c0_i32_0 = arith.constant 0 : i32
    return %c0_i32, %arg0 : i32, i32
  }
  func.func @transform_1(%arg0: i32) -> (i32, i32) {
    %c0_i32 = arith.constant 0 : i32
    %c0_i32_0 = arith.constant 0 : i32
    %c0_i32_1 = arith.constant 0 : i32
    return %c0_i32, %c0_i32_0 : i32, i32
  }
  func.func @transform_2(%arg0: i32) -> (i32, i32) {
    %c0_i32 = arith.constant 0 : i32
    %c0_i32_0 = arith.constant 0 : i32
    %c0_i32_1 = arith.constant 0 : i32
    return %c0_i32, %c0_i32_0 : i32, i32
  }
  func.func @transform_3(%arg0: i32) -> (i32, i32) {
    %c0_i32 = arith.constant 0 : i32
    %c0_i32_0 = arith.constant 0 : i32
    return %c0_i32, %arg0 : i32, i32
  }
  func.func @transform_4(%arg0: i32) -> (i32, i32, i32) {
    %c0_i32 = arith.constant 0 : i32
    %c0_i32_0 = arith.constant 0 : i32
    %c0_i32_1 = arith.constant 0 : i32
    return %arg0, %c0_i32, %c0_i32_0 : i32, i32, i32
  }
}

module attributes {stable_mosaic.version = 11 : i64} {
  func.func @defuzz_kernel(%arg0: i32, %arg1: memref<8x256xf32, #tpu.memory_space<vmem>>, %arg2: memref<3x8xf32, #tpu.memory_space<vmem>>, %arg3: memref<16x8xf32, #tpu.memory_space<vmem>>, %arg4: memref<10x8xf32, #tpu.memory_space<vmem>>, %arg5: memref<24x1xf32, #tpu.memory_space<vmem>>, %arg6: memref<10x256xf32, #tpu.memory_space<vmem>>) attributes {dimension_semantics = [#tpu.dimension_semantics<parallel>], iteration_bounds = array<i64: 2>, scalar_prefetch = 0 : i64, scratch_operands = 0 : i64, tpu.core_type = #tpu.core_type<tc>, window_params = [{transform_indices = @transform_0, window_bounds = array<i64: 8, 256>}, {pipeline_mode = #tpu.pipeline_mode<synchronous>, transform_indices = @transform_1, window_bounds = array<i64: 3, 8>}, {pipeline_mode = #tpu.pipeline_mode<synchronous>, transform_indices = @transform_2, window_bounds = array<i64: 16, 8>}, {pipeline_mode = #tpu.pipeline_mode<synchronous>, transform_indices = @transform_3, window_bounds = array<i64: 10, 8>}, {pipeline_mode = #tpu.pipeline_mode<synchronous>, transform_indices = @transform_4, window_bounds = array<i64: 24, 1>}, {transform_indices = @transform_5, window_bounds = array<i64: 10, 256>}]} {
    %c0 = arith.constant 0 : index
    %c0_0 = arith.constant 0 : index
    %0 = vector.load %arg1[%c0, %c0_0] : memref<8x256xf32, #tpu.memory_space<vmem>>, vector<8x256xf32>
    %c0_1 = arith.constant 0 : index
    %c0_2 = arith.constant 0 : index
    %1 = vector.load %arg5[%c0_1, %c0_2] : memref<24x1xf32, #tpu.memory_space<vmem>>, vector<3x1xf32>
    %c8 = arith.constant 8 : index
    %c0_3 = arith.constant 0 : index
    %2 = vector.load %arg5[%c8, %c0_3] : memref<24x1xf32, #tpu.memory_space<vmem>>, vector<10x1xf32>
    %c0_4 = arith.constant 0 : index
    %c0_5 = arith.constant 0 : index
    %3 = vector.load %arg2[%c0_4, %c0_5] : memref<3x8xf32, #tpu.memory_space<vmem>>, vector<3x8xf32>
    %cst = arith.constant dense<0.000000e+00> : vector<3x256xf32>
    %4 = tpu.matmul %3, %0, %cst {dimension_numbers = #tpu.dot_dimension_numbers<[1], [0], [0], [1], [0, 0, 1, 1], [], []>} : vector<3x8xf32>, vector<8x256xf32>, vector<3x256xf32> -> vector<3x256xf32>
    %5 = vector.broadcast %1 : vector<3x1xf32> to vector<3x256xf32>
    %6 = arith.addf %4, %5 : vector<3x256xf32>
    %cst_6 = arith.constant 5.000000e-01 : f32
    %7 = vector.broadcast %cst_6 : f32 to vector<3x256xf32>
    %8 = arith.mulf %7, %6 : vector<3x256xf32>
    %9 = math.cos %8 : vector<3x256xf32>
    %10 = math.sin %8 : vector<3x256xf32>
    %11 = arith.subf %10, %9 : vector<3x256xf32>
    %12 = tpu.iota {dimensions = array<i32: 0>} : vector<8x1xi32>
    %c0_i32 = arith.constant 0 : i32
    %13 = vector.broadcast %c0_i32 : i32 to vector<8x1xi32>
    %14 = arith.shrsi %12, %13 : vector<8x1xi32>
    %c1_i32 = arith.constant 1 : i32
    %15 = vector.broadcast %c1_i32 : i32 to vector<8x1xi32>
    %16 = arith.andi %14, %15 : vector<8x1xi32>
    %17 = arith.sitofp %16 : vector<8x1xi32> to vector<8x1xf32>
    %18 = vector.extract_strided_slice %9 {offsets = [0, 0], sizes = [1, 256], strides = [1, 1]} : vector<3x256xf32> to vector<1x256xf32>
    %19 = vector.extract_strided_slice %11 {offsets = [0, 0], sizes = [1, 256], strides = [1, 1]} : vector<3x256xf32> to vector<1x256xf32>
    %20 = vector.broadcast %17 : vector<8x1xf32> to vector<8x256xf32>
    %21 = vector.broadcast %19 : vector<1x256xf32> to vector<8x256xf32>
    %22 = arith.mulf %20, %21 : vector<8x256xf32>
    %23 = vector.broadcast %18 : vector<1x256xf32> to vector<8x256xf32>
    %24 = arith.addf %23, %22 : vector<8x256xf32>
    %c1_i32_7 = arith.constant 1 : i32
    %25 = vector.broadcast %c1_i32_7 : i32 to vector<8x1xi32>
    %26 = arith.shrsi %12, %25 : vector<8x1xi32>
    %c1_i32_8 = arith.constant 1 : i32
    %27 = vector.broadcast %c1_i32_8 : i32 to vector<8x1xi32>
    %28 = arith.andi %26, %27 : vector<8x1xi32>
    %29 = arith.sitofp %28 : vector<8x1xi32> to vector<8x1xf32>
    %30 = vector.extract_strided_slice %9 {offsets = [1, 0], sizes = [1, 256], strides = [1, 1]} : vector<3x256xf32> to vector<1x256xf32>
    %31 = vector.extract_strided_slice %11 {offsets = [1, 0], sizes = [1, 256], strides = [1, 1]} : vector<3x256xf32> to vector<1x256xf32>
    %32 = vector.broadcast %29 : vector<8x1xf32> to vector<8x256xf32>
    %33 = vector.broadcast %31 : vector<1x256xf32> to vector<8x256xf32>
    %34 = arith.mulf %32, %33 : vector<8x256xf32>
    %35 = vector.broadcast %30 : vector<1x256xf32> to vector<8x256xf32>
    %36 = arith.addf %35, %34 : vector<8x256xf32>
    %37 = arith.mulf %24, %36 : vector<8x256xf32>
    %c2_i32 = arith.constant 2 : i32
    %38 = vector.broadcast %c2_i32 : i32 to vector<8x1xi32>
    %39 = arith.shrsi %12, %38 : vector<8x1xi32>
    %c1_i32_9 = arith.constant 1 : i32
    %40 = vector.broadcast %c1_i32_9 : i32 to vector<8x1xi32>
    %41 = arith.andi %39, %40 : vector<8x1xi32>
    %42 = arith.sitofp %41 : vector<8x1xi32> to vector<8x1xf32>
    %43 = vector.extract_strided_slice %9 {offsets = [2, 0], sizes = [1, 256], strides = [1, 1]} : vector<3x256xf32> to vector<1x256xf32>
    %44 = vector.extract_strided_slice %11 {offsets = [2, 0], sizes = [1, 256], strides = [1, 1]} : vector<3x256xf32> to vector<1x256xf32>
    %45 = vector.broadcast %42 : vector<8x1xf32> to vector<8x256xf32>
    %46 = vector.broadcast %44 : vector<1x256xf32> to vector<8x256xf32>
    %47 = arith.mulf %45, %46 : vector<8x256xf32>
    %48 = vector.broadcast %43 : vector<1x256xf32> to vector<8x256xf32>
    %49 = arith.addf %48, %47 : vector<8x256xf32>
    %50 = arith.mulf %37, %49 : vector<8x256xf32>
    %c0_10 = arith.constant 0 : index
    %c0_11 = arith.constant 0 : index
    %51 = vector.load %arg3[%c0_10, %c0_11] : memref<16x8xf32, #tpu.memory_space<vmem>>, vector<16x8xf32>
    %cst_12 = arith.constant dense<0.000000e+00> : vector<16x256xf32>
    %52 = tpu.matmul %51, %50, %cst_12 {dimension_numbers = #tpu.dot_dimension_numbers<[1], [0], [0], [1], [0, 0, 1, 1], [], []>} : vector<16x8xf32>, vector<8x256xf32>, vector<16x256xf32> -> vector<16x256xf32>
    %53 = vector.extract_strided_slice %52 {offsets = [0, 0], sizes = [8, 256], strides = [1, 1]} : vector<16x256xf32> to vector<8x256xf32>
    %54 = vector.extract_strided_slice %52 {offsets = [8, 0], sizes = [8, 256], strides = [1, 1]} : vector<16x256xf32> to vector<8x256xf32>
    %55 = arith.mulf %53, %53 : vector<8x256xf32>
    %56 = arith.mulf %54, %54 : vector<8x256xf32>
    %57 = arith.addf %55, %56 : vector<8x256xf32>
    %c0_13 = arith.constant 0 : index
    %c0_14 = arith.constant 0 : index
    %58 = vector.load %arg4[%c0_13, %c0_14] : memref<10x8xf32, #tpu.memory_space<vmem>>, vector<10x8xf32>
    %cst_15 = arith.constant dense<0.000000e+00> : vector<10x256xf32>
    %59 = tpu.matmul %58, %57, %cst_15 {dimension_numbers = #tpu.dot_dimension_numbers<[1], [0], [0], [1], [0, 0, 1, 1], [], []>} : vector<10x8xf32>, vector<8x256xf32>, vector<10x256xf32> -> vector<10x256xf32>
    %60 = vector.broadcast %2 : vector<10x1xf32> to vector<10x256xf32>
    %61 = arith.addf %59, %60 : vector<10x256xf32>
    %c0_16 = arith.constant 0 : index
    %c0_17 = arith.constant 0 : index
    %62 = vector.load %arg6[%c0_16, %c0_17] : memref<10x256xf32, #tpu.memory_space<vmem>>, vector<10x256xf32>
    tpu.vector_store %arg6[%c0_16, %c0_17], %61 {strides = array<i32>} : memref<10x256xf32, #tpu.memory_space<vmem>>, vector<10x256xf32>,
    return
  }
  func.func @transform_0(%arg0: i32) -> (i32, i32) {
    %c0_i32 = arith.constant 0 : i32
    %c0_i32_0 = arith.constant 0 : i32
    return %c0_i32, %arg0 : i32, i32
  }
  func.func @transform_1(%arg0: i32) -> (i32, i32) {
    %c0_i32 = arith.constant 0 : i32
    %c0_i32_0 = arith.constant 0 : i32
    %c0_i32_1 = arith.constant 0 : i32
    return %c0_i32, %c0_i32_0 : i32, i32
  }
  func.func @transform_2(%arg0: i32) -> (i32, i32) {
    %c0_i32 = arith.constant 0 : i32
    %c0_i32_0 = arith.constant 0 : i32
    %c0_i32_1 = arith.constant 0 : i32
    return %c0_i32, %c0_i32_0 : i32, i32
  }
  func.func @transform_3(%arg0: i32) -> (i32, i32) {
    %c0_i32 = arith.constant 0 : i32
    %c0_i32_0 = arith.constant 0 : i32
    %c0_i32_1 = arith.constant 0 : i32
    return %c0_i32, %c0_i32_0 : i32, i32
  }
  func.func @transform_4(%arg0: i32) -> (i32, i32) {
    %c0_i32 = arith.constant 0 : i32
    %c0_i32_0 = arith.constant 0 : i32
    %c0_i32_1 = arith.constant 0 : i32
    return %c0_i32, %c0_i32_0 : i32, i32
  }
  func.func @transform_5(%arg0: i32) -> (i32, i32) {
    %c0_i32 = arith.constant 0 : i32
    %c0_i32_0 = arith.constant 0 : i32
    return %c0_i32, %arg0 : i32, i32
  }
}

</mosaic_0001>

<llo_original>
// kernel: qfnn_forward.3
$region0: #{qfnn_forward.3}
  #allocation0 [shape = 'u32[]', space=smem, size = 0x4, offset = 0x4, fixed_abs, tag = 'smem constant byte address 0x4 - core index']
  #allocation1 [shape = 'u32[72,128]{1,0:T(1,128)}', space=vmem, size = 0x9000, scoped, tag = 'internal scratch']
  %s0 = inlined_call_operand.vmem [shape: f32[8,512], index: 0, kind: input, shape index: {}]
  %s1 = inlined_call_operand.vmem [shape: f32[3,8], index: 1, kind: input, shape index: {}]
  %s2 = inlined_call_operand.vmem [shape: f32[16,8], index: 2, kind: input, shape index: {}]
  %s3 = inlined_call_operand.vmem [shape: f32[10,8], index: 3, kind: input, shape index: {}]
  %s4 = inlined_call_operand.vmem [shape: f32[24,1], index: 4, kind: input, shape index: {}]
  %s5 = inlined_call_operand.vmem [shape: f32[10,512], index: 5, kind: output, shape index: {}]
  %s6 = sld [smem:[#allocation0]]
  $region72: #{qfnn_forward.3} parent=0
    _
  %s8 = ssub.s32 1, %s6
  %s9 = scalar_select 0, %s8, %s6
  $region1: #{qfnn_forward.3} parent=0
    #allocation2 [shape = 'u8[32768]{0}', space=vmem, size = 0x8000, scoped, tag = 'output window, operand 0']
    loop: start=0, step=1, limit=4
    $region2: #{qfnn_forward.3} parent=1 // loop_pre_header
      _
    $region3: #{qfnn_forward.3} parent=1 // loop_header
      %s11 = sphi 0, %s15
      %p12 = scmp.ge.s32.totalorder %s11, 4
      %s21 = sphi 0, %s23
      %s24 = sphi 0, %s21
      %s25 = sphi 0, %s24
      %s41 = sphi 0, %s25
      %s45 = sphi 0, %s45
      %s47 = sphi 0, %s45
      %s48 = sphi 0, %s47
      %s62 = sphi 0, %s48
      %s66 = sphi 0, %s66
      %s68 = sphi 0, %s66
      %s69 = sphi 0, %s68
      %s83 = sphi 0, %s69
      %s87 = sphi 0, %s87
      %s89 = sphi 0, %s87
      %s90 = sphi 0, %s89
      %s104 = sphi 0, %s90
      %s108 = sphi 0, %s108
      %s110 = sphi 0, %s108
      %s111 = sphi 0, %s110
      %s125 = sphi 0, %s111
      %s131 = sphi 0, %s133
      %s134 = sphi 0, %s131
      %s135 = sphi 0, %s134
      %s151 = sphi 0, %s135
    $region4: #{qfnn_forward.3} parent=1 // loop_header_branch
      %14 = sbr.rel (%p12) target = $region8
    $region5: #{qfnn_forward.3} parent=1 // loop_body
      %s16 = ssub.s32 %s11, 1
      %s17 = ssub.s32 %s11, 2
      %s18 = sadd.s32 %s11, 1
      %s19 = ssub.s32 %s11, %s18
      %p20 = scmp.eq.s32.totalorder %s19, 0
      %s22 = sadd.s32 %s21, 1
      %s23 = scalar_select %p20, %s21, %s22
      %p26 = pneg %p20
      %p27 = scmp.eq.s32.totalorder %s11, 1
      %p28 = por %p26, %p27
      %p29 = scmp.ne.s32.totalorder %s21, %s24
      %p30 = scmp.eq.s32.totalorder %s11, 0
      %p31 = por %p29, %p30
      %p32 = scmp.ne.s32.totalorder %s21, %s24
      %p33 = scmp.eq.s32.totalorder %s16, 1
      %p34 = por %p32, %p33
      %p35 = scmp.ne.s32.totalorder %s24, %s25
      %p36 = scmp.eq.s32.totalorder %s16, 0
      %p37 = por %p35, %p36
      %p38 = scmp.ne.s32.totalorder %s24, %s25
      %p39 = scmp.eq.s32.totalorder %s17, 1
      %p40 = por %p38, %p39
      %p42 = scmp.ne.s32.totalorder %s25, %s41
      %p43 = scmp.eq.s32.totalorder %s17, 0
      %p44 = por %p42, %p43
      %s46 = sadd.s32 %s45, 1
      %p49 = scmp.eq.s32.totalorder %s11, 1
      %p50 = scmp.ne.s32.totalorder %s45, %s47
      %p51 = scmp.eq.s32.totalorder %s11, 0
      %p52 = por %p50, %p51
      %p53 = scmp.ne.s32.totalorder %s45, %s47
      %p54 = scmp.eq.s32.totalorder %s16, 1
      %p55 = por %p53, %p54
      %p56 = scmp.ne.s32.totalorder %s47, %s48
      %p57 = scmp.eq.s32.totalorder %s16, 0
      %p58 = por %p56, %p57
      %p59 = scmp.ne.s32.totalorder %s47, %s48
      %p60 = scmp.eq.s32.totalorder %s17, 1
      %p61 = por %p59, %p60
      %p63 = scmp.ne.s32.totalorder %s48, %s62
      %p64 = scmp.eq.s32.totalorder %s17, 0
      %p65 = por %p63, %p64
      %s67 = sadd.s32 %s66, 1
      %p70 = scmp.eq.s32.totalorder %s11, 1
      %p71 = scmp.ne.s32.totalorder %s66, %s68
      %p72 = scmp.eq.s32.totalorder %s11, 0
      %p73 = por %p71, %p72
      %p74 = scmp.ne.s32.totalorder %s66, %s68
      %p75 = scmp.eq.s32.totalorder %s16, 1
      %p76 = por %p74, %p75
      %p77 = scmp.ne.s32.totalorder %s68, %s69
      %p78 = scmp.eq.s32.totalorder %s16, 0
      %p79 = por %p77, %p78
      %p80 = scmp.ne.s32.totalorder %s68, %s69
      %p81 = scmp.eq.s32.totalorder %s17, 1
      %p82 = por %p80, %p81
      %p84 = scmp.ne.s32.totalorder %s69, %s83
      %p85 = scmp.eq.s32.totalorder %s17, 0
      %p86 = por %p84, %p85
      %s88 = sadd.s32 %s87, 1
      %p91 = scmp.eq.s32.totalorder %s11, 1
      %p92 = scmp.ne.s32.totalorder %s87, %s89
      %p93 = scmp.eq.s32.totalorder %s11, 0
      %p94 = por %p92, %p93
      %p95 = scmp.ne.s32.totalorder %s87, %s89
      %p96 = scmp.eq.s32.totalorder %s16, 1
      %p97 = por %p95, %p96
      %p98 = scmp.ne.s32.totalorder %s89, %s90
      %p99 = scmp.eq.s32.totalorder %s16, 0
      %p100 = por %p98, %p99
      %p101 = scmp.ne.s32.totalorder %s89, %s90
      %p102 = scmp.eq.s32.totalorder %s17, 1
      %p103 = por %p101, %p102
      %p105 = scmp.ne.s32.totalorder %s90, %s104
      %p106 = scmp.eq.s32.totalorder %s17, 0
      %p107 = por %p105, %p106
      %s109 = sadd.s32 %s108, 1
      %p112 = scmp.eq.s32.totalorder %s11, 1
      %p113 = scmp.ne.s32.totalorder %s108, %s110
      %p114 = scmp.eq.s32.totalorder %s11, 0
      %p115 = por %p113, %p114
      %p116 = scmp.ne.s32.totalorder %s108, %s110
      %p117 = scmp.eq.s32.totalorder %s16, 1
      %p118 = por %p116, %p117
      %p119 = scmp.ne.s32.totalorder %s110, %s111
      %p120 = scmp.eq.s32.totalorder %s16, 0
      %p121 = por %p119, %p120
      %p122 = scmp.ne.s32.totalorder %s110, %s111
      %p123 = scmp.eq.s32.totalorder %s17, 1
      %p124 = por %p122, %p123
      %p126 = scmp.ne.s32.totalorder %s111, %s125
      %p127 = scmp.eq.s32.totalorder %s17, 0
      %p128 = por %p126, %p127
      %s129 = ssub.s32 %s11, %s18
      %p130 = scmp.eq.s32.totalorder %s129, 0
      %s132 = sadd.s32 %s131, 1
      %s133 = scalar_select %p130, %s131, %s132
      %p136 = pneg %p130
      %p137 = scmp.eq.s32.totalorder %s11, 1
      %p138 = por %p136, %p137
      %p139 = scmp.ne.s32.totalorder %s131, %s134
      %p140 = scmp.eq.s32.totalorder %s11, 0
      %p141 = por %p139, %p140
      %p142 = scmp.ne.s32.totalorder %s131, %s134
      %p143 = scmp.eq.s32.totalorder %s16, 1
      %p144 = por %p142, %p143
      %p145 = scmp.ne.s32.totalorder %s134, %s135
      %p146 = scmp.eq.s32.totalorder %s16, 0
      %p147 = por %p145, %p146
      %p148 = scmp.ne.s32.totalorder %s134, %s135
      %p149 = scmp.eq.s32.totalorder %s17, 1
      %p150 = por %p148, %p149
      %p152 = scmp.ne.s32.totalorder %s135, %s151
      %p153 = scmp.eq.s32.totalorder %s17, 0
      %p154 = por %p152, %p153
      %p155 = scmp.le.s32.totalorder 1, %s11
      %p156 = scmp.lt.s32.totalorder %s11, 3
      %p157 = pnand %p155, %p156
      %p158 = pneg %p157
      // Predicated region
      $region9: #{qfnn_forward.3} parent=5 // pred_check
        _
      $region10: #{qfnn_forward.3} parent=5 // pred_check_branch
        %160 = sbr.rel (%p157) target = $region12
      $region11: #{qfnn_forward.3} parent=5 // pred_region
        %s161 = ssub.s32 %s11, 1
        // Predicated region
        $region13: #{qfnn_forward.3} parent=11 // pred_check
          %p162 = pneg %p58
        $region14: #{qfnn_forward.3} parent=11 // pred_check_branch
          %164 = sbr.rel (%p162) target = $region16
        $region15: #{qfnn_forward.3} parent=11 // pred_region
          _
        $region16: #{qfnn_forward.3} parent=11 // pred_fallthru
          _
        // Predicated region
        $region17: #{qfnn_forward.3} parent=11 // pred_check
          %p165 = pneg %p79
        $region18: #{qfnn_forward.3} parent=11 // pred_check_branch
          %167 = sbr.rel (%p165) target = $region20
        $region19: #{qfnn_forward.3} parent=11 // pred_region
          _
        $region20: #{qfnn_forward.3} parent=11 // pred_fallthru
          _
        // Predicated region
        $region21: #{qfnn_forward.3} parent=11 // pred_check
          %p168 = pneg %p100
        $region22: #{qfnn_forward.3} parent=11 // pred_check_branch
          %170 = sbr.rel (%p168) target = $region24
        $region23: #{qfnn_forward.3} parent=11 // pred_region
          _
        $region24: #{qfnn_forward.3} parent=11 // pred_fallthru
          _
        // Predicated region
        $region25: #{qfnn_forward.3} parent=11 // pred_check
          %p171 = pneg %p121
        $region26: #{qfnn_forward.3} parent=11 // pred_check_branch
          %173 = sbr.rel (%p171) target = $region28
        $region27: #{qfnn_forward.3} parent=11 // pred_region
          _
        $region28: #{qfnn_forward.3} parent=11 // pred_fallthru
          _
      $region12: #{qfnn_forward.3} parent=5 // pred_fallthru
        _
      %p174 = scmp.lt.s32.totalorder %s11, 2
      // Predicated region
      $region29: #{qfnn_forward.3} parent=5 // pred_check
        %p175 = pneg %p174
      $region30: #{qfnn_forward.3} parent=5 // pred_check_branch
        %177 = sbr.rel (%p175) target = $region32
      $region31: #{qfnn_forward.3} parent=5 // pred_region
        // Predicated region
        $region33: #{qfnn_forward.3} parent=31 // pred_check
          %p178 = pneg %p31
        $region34: #{qfnn_forward.3} parent=31 // pred_check_branch
          %180 = sbr.rel (%p178) target = $region36
        $region35: #{qfnn_forward.3} parent=31 // pred_region
          %s181 = smul.u32 2, %s11
          %p182 = scmp.lt.s32.totalorder %s181, 3
          %s183 = scalar_select %p182, %s181, 3
          %s184 = smul.addr %s183, 8
          %s185 = scalar_lea.vmem %s0, %s184
          %s186 = smul.u32 2, %s11
        $region36: #{qfnn_forward.3} parent=31 // pred_fallthru
          _
      $region32: #{qfnn_forward.3} parent=5 // pred_fallthru
        _
      %p187 = scmp.le.s32.totalorder 1, %s11
      %p188 = scmp.lt.s32.totalorder %s11, 3
      %p189 = pnand %p187, %p188
      %p190 = pneg %p189
      // Predicated region
      $region37: #{qfnn_forward.3} parent=5 // pred_check
        _
      $region38: #{qfnn_forward.3} parent=5 // pred_check_branch
        %192 = sbr.rel (%p189) target = $region40
      $region39: #{qfnn_forward.3} parent=5 // pred_region
        %s193 = ssub.s32 %s11, 1
        %s194 = smul.u32 2, %s16
        %p195 = scmp.lt.s32.totalorder %s194, 3
        %s196 = scalar_select %p195, %s194, 3
        %s197 = smul.addr %s196, 8
        %s198 = scalar_lea.vmem %s0, %s197
        %p199 = pneg %p37
        %p200 = pneg %p34
        %p201 = pneg %p58
        %p202 = pneg %p55
        %p203 = pneg %p79
        %p204 = pneg %p76
        %p205 = pneg %p100
        %p206 = pneg %p97
        %p207 = pneg %p121
        %p208 = pneg %p118
        %p209 = pneg %p147
        %p210 = pneg %p144
        %s211 = sand.u32 %s134, 1
        %s212 = sand.u32 %s134, 1
        %s213 = smul.addr %s212, 32
        %s214 = scalar_lea.vmem [#allocation2], %s213
        %s215 = smul.u32 2, %s16
        %p216 = scmp.lt.s32.totalorder %s215, 3
        %s217 = scalar_select %p216, %s215, 3
        %s218 = smul.addr %s217, 8
        %s219 = scalar_lea.vmem %s0, %s218
        %s220 = smul.u32 2, %s16
        %s221 = smul.u32 2, %s16
        %v222 = vld [vmem:[%s219] sm:$0xff]
        %v223 = vld [vmem:[%s219 + $0x8] sm:$0xff]
        %v224 = vld [vmem:[%s4] sm:$0x7]
        %v225 = vld [vmem:[%s4 + $0x8] sm:$0xff]
        %v226 = vld [vmem:[%s4 + $0x10] sm:$0x3]
        %v227 = vld [vmem:[%s1] sm:$0x7]
        %229 = vset.pattern.permute.xlu0 0
        %230 = vperm.xlu0 %229, %v224
        %v231 = vpop.permute.xlu0 %230
        %vm233 = vcmask 64512
        %v235 = vsel %vm233, %v227, 0
        %237 = vmatpush.msra.mxu0 0.0
        %238 = vmatpush.msra.mxu0 0.0
        %239 = vmatpush.msra.mxu0 0.0
        %240 = vmatpush.msra.mxu0 0.0
        %241 = vmatpush.msra.mxu0 0.0
        %242 = vmatpush.msra.mxu0 0.0
        %243 = vmatpush.msra.mxu0 0.0
        %244 = vmatpush.msra.mxu0 0.0
        %245 = vmatpush.msra.mxu0 0.0
        %246 = vmatpush.msra.mxu0 0.0
        %247 = vmatpush.msra.mxu0 0.0
        %248 = vmatpush.msra.mxu0 0.0
        %249 = vmatpush.msra.mxu0 0.0
        %250 = vmatpush.msra.mxu0 0.0
        %251 = vmatpush.msra.mxu0 0.0
        %252 = vmatpush.msra.mxu0 %v222
        %253 = vmatmul.f32.gmra.mxu0 %v235
        %v254 = vpop.f32.mrf.mxu0
        %v255 = vadd.f32 %v231, %v254
        %256 = vdwg.mxu0
        %257 = vmatpush.msra.mxu0 0.0
        %258 = vmatpush.msra.mxu0 0.0
        %259 = vmatpush.msra.mxu0 0.0
        %260 = vmatpush.msra.mxu0 0.0
        %261 = vmatpush.msra.mxu0 0.0
        %262 = vmatpush.msra.mxu0 0.0
        %263 = vmatpush.msra.mxu0 0.0
        %264 = vmatpush.msra.mxu0 0.0
        %265 = vmatpush.msra.mxu0 0.0
        %266 = vmatpush.msra.mxu0 0.0
        %267 = vmatpush.msra.mxu0 0.0
        %268 = vmatpush.msra.mxu0 0.0
        %269 = vmatpush.msra.mxu0 0.0
        %270 = vmatpush.msra.mxu0 0.0
        %271 = vmatpush.msra.mxu0 0.0
        %272 = vmatpush.msra.mxu0 %v223
        %273 = vmatmul.f32.gmra.mxu0 %v235
        %v274 = vpop.f32.mrf.mxu0
        %v275 = vadd.f32 %v231, %v274
        %276 = vdwg.mxu0
        %v277 = vmul.f32 %v255, 0.5
        %v278 = vmul.f32 %v275, 0.5
        %v279 = vand.u32 2147483647, %v277
        %vm280 = vcmp.le.f32.partialorder %v279, 0.7853982
        %vm281 = vcmp.lt.s32.totalorder %v277, 0
        %v282 = vand.u32 %v277, 2139095040
        %v283 = vshrl.u32 %v282, 23
        %v284 = vsub.s32 %v283, 127
        %v285 = vand.u32 2147483647, %v277
        %v286 = vand.u32 %v285, 8388607
        %v287 = vor.u32 %v286, 8388608
        %v288 = vsub.s32 0, %v287
        %v289 = vadd.s32 %v284, 1
        %vm290 = vcmp.gt.s32.totalorder %v289, 0
        %v291 = vsel %vm290, %v289, 0
        %v292 = vshrl.u32 %v291, 5
        %v293 = vand.u32 %v291, 31
        %v294 = vsub.s32 32, %v293
        %v295 = vshrl.u32 683565275, %v294
        %v296 = vshll.u32 683565275, %v293
        %v297 = vshrl.u32 2475754826, %v294
        %v298 = vor.u32 %v296, %v297
        %v299 = vshll.u32 2475754826, %v293
        %v300 = vshrl.u32 2131351028, %v294
        %v301 = vor.u32 %v299, %v300
        %v302 = vshll.u32 2131351028, %v293
        %v303 = vshrl.u32 2102212464, %v294
        %v304 = vor.u32 %v302, %v303
        %v305 = vshll.u32 2102212464, %v293
        %v306 = vshrl.u32 920167782, %v294
        %v307 = vor.u32 %v305, %v306
        %v308 = vshll.u32 920167782, %v293
        %v309 = vshrl.u32 1326507024, %v294
        %v310 = vor.u32 %v308, %v309
        %vm311 = vcmp.lt.s32.totalorder %v292, 1
        %vm312 = vcmp.lt.s32.totalorder %v292, 2
        %vm313 = vcmp.lt.s32.totalorder %v292, 3
        %vm314 = vcmp.lt.s32.totalorder %v292, 4
        %v315 = vsel %vm311, %v295, %v298
        %v316 = vsel %vm314, %v304, 2102212464
        %v317 = vsel %vm313, %v301, %v316
        %v318 = vsel %vm312, %v315, %v317
        %v319 = vsel %vm311, %v298, %v301
        %v320 = vsel %vm314, %v307, 920167782
        %v321 = vsel %vm313, %v304, %v320
        %v322 = vsel %vm312, %v319, %v321
        %v323 = vsel %vm311, %v301, %v304
        %v324 = vsel %vm314, %v310, 1326507024
        %v325 = vsel %vm313, %v307, %v324
        %v326 = vsel %vm312, %v323, %v325
        %v327 = vshll.u32 %v287, 8
        %v328 = vand.u32 %v327, 65535
        %v329 = vshrl.u32 %v327, 16
        %v330 = vand.u32 %v326, 65535
        %v331 = vshrl.u32 %v326, 16
        %v332 = vmul.u32 %v328, %v330
        %v333 = vmul.u32 %v328, %v331
        %v334 = vmul.u32 %v329, %v330
        %v335 = vmul.u32 %v329, %v331
        %v336 = vshll.u32 %v333, 16
        %v337 = vshrl.u32 %v333, 16
        %v338 = vshll.u32 %v334, 16
        %v339 = vshrl.u32 %v334, 16
        %vm340 = vc.u32 %v332, %v336
        %v341 = vsel %vm340, 1, 0
        %v342 = vadd.s32 %v332, %v336
        %v343 = vadd.s32 %v335, %v341
        %vm344 = vc.u32 %v342, %v338
        %v345 = vsel %vm344, 1, 0
        %v346 = vadd.s32 %v342, %v338
        %v347 = vadd.s32 %v343, %v345
        %v348 = vadd.s32 %v347, %v337
        %v349 = vadd.s32 %v348, %v339
        %v350 = vand.u32 %v327, 65535
        %v351 = vshrl.u32 %v327, 16
        %v352 = vand.u32 %v322, 65535
        %v353 = vshrl.u32 %v322, 16
        %v354 = vmul.u32 %v350, %v352
        %v355 = vmul.u32 %v350, %v353
        %v356 = vmul.u32 %v351, %v352
        %v357 = vmul.u32 %v351, %v353
        %v358 = vshll.u32 %v355, 16
        %v359 = vshrl.u32 %v355, 16
        %v360 = vshll.u32 %v356, 16
        %v361 = vshrl.u32 %v356, 16
        %vm362 = vc.u32 %v354, %v358
        %v363 = vsel %vm362, 1, 0
        %v364 = vadd.s32 %v354, %v358
        %v365 = vadd.s32 %v357, %v363
        %vm366 = vc.u32 %v364, %v360
        %v367 = vsel %vm366, 1, 0
        %v368 = vadd.s32 %v364, %v360
        %v369 = vadd.s32 %v365, %v367
        %v370 = vadd.s32 %v369, %v359
        %v371 = vadd.s32 %v370, %v361
        %v372 = vmul.u32 %v327, %v318
        %v373 = vadd.s32 %v349, %v368
        %vm374 = vc.u32 %v349, %v368
        %v375 = vadd.s32 %v371, 1
        %v376 = vsel %vm374, %v375, %v371
        %v377 = vadd.s32 %v372, %v376
        %v378 = vadd.s32 %v377, 536870912
        %v379 = vshrl.u32 %v378, 30
        %v380 = vshll.u32 %v379, 30
        %v381 = vsub.s32 %v377, %v380
        %vm382 = vcmp.lt.s32.totalorder %v381, 0
        %v383 = vsub.s32 0, %v381
        %v384 = vsel %vm382, %v383, %v381
        %v385 = vclz %v384
        %v386 = vsub.s32 %v385, 2
        %vm387 = vcmp.gt.s32.totalorder 0, %v386
        %v388 = vsel %vm387, 0, %v386
        %v389 = vsub.s32 32, %v388
        %v390 = vshll.u32 %v381, %v388
        %v391 = vshrl.u32 %v373, %v389
        %v392 = vor.u32 %v390, %v391
        %v393 = vsub.s32 4294967266, %v388
        %v394 = vadd.s32 %v393, 127
        %v395 = vshll.u32 %v394, 23
        %v396 = vor.u32 4788187, %v395
        %v397 = vand.u32 2147483647, %v396
        %v399 = vcvt.s32.f32 %v392
        %v400 = vmul.f32 %v399, %v397
        %v401 = vxor.u32 %v400, 2147483648
        %v402 = vsel %vm281, %v401, %v400
        %v403 = vsub.s32 4, %v379
        %v404 = vsel %vm281, %v403, %v379
        %v405 = vsel %vm280, %v277, %v402
        %v406 = vsel %vm280, 0, %v404
        %v407 = vmul.f32 %v405, %v405
        %v408 = vmul.f32 %v407, -0.001358992
        %v409 = vadd.f32 %v408, 0.041655596
        %v410 = vmul.f32 %v407, %v409
        %v411 = vadd.f32 %v410, -0.4999988
        %v412 = vmul.f32 %v407, %v411
        %v413 = vadd.f32 1.0, %v412
        %v414 = vmul.f32 %v405, %v405
        %v415 = vmul.f32 %v414, -0.00019511016
        %v416 = vadd.f32 %v415, 0.008332121
        %v417 = vmul.f32 %v414, %v416
        %v418 = vadd.f32 %v417, -0.16666654
        %v419 = vmul.f32 %v414, %v418
        %v420 = vadd.f32 %v419, 1.0
        %v421 = vmul.f32 %v420, %v405
        %vm422 = vweird.f32 %v277
        %v423 = vand.u32 %v406, 3
        %vm424 = vcmp.lt.s32.totalorder %v423, 2
        %vm425 = vcmp.eq.s32.totalorder %v423, 0
        %v426 = vxor.u32 %v421, 2147483648
        %v427 = vsel %vm425, %v413, %v426
        %vm428 = vcmp.eq.s32.totalorder %v423, 2
        %v429 = vxor.u32 %v413, 2147483648
        %v430 = vsel %vm428, %v429, %v421
        %v431 = vsel %vm424, %v427, %v430
        %v432 = vsel %vm422, nan, %v431
        %v433 = vand.u32 2147483647, %v278
        %vm434 = vcmp.le.f32.partialorder %v433, 0.7853982
        %vm435 = vcmp.lt.s32.totalorder %v278, 0
        %v436 = vand.u32 %v278, 2139095040
        %v437 = vshrl.u32 %v436, 23
        %v438 = vsub.s32 %v437, 127
        %v439 = vand.u32 2147483647, %v278
        %v440 = vand.u32 %v439, 8388607
        %v441 = vor.u32 %v440, 8388608
        %v442 = vsub.s32 0, %v441
        %v443 = vadd.s32 %v438, 1
        %vm444 = vcmp.gt.s32.totalorder %v443, 0
        %v445 = vsel %vm444, %v443, 0
        %v446 = vshrl.u32 %v445, 5
        %v447 = vand.u32 %v445, 31
        %v448 = vsub.s32 32, %v447
        %v449 = vshrl.u32 683565275, %v448
        %v450 = vshll.u32 683565275, %v447
        %v451 = vshrl.u32 2475754826, %v448
        %v452 = vor.u32 %v450, %v451
        %v453 = vshll.u32 2475754826, %v447
        %v454 = vshrl.u32 2131351028, %v448
        %v455 = vor.u32 %v453, %v454
        %v456 = vshll.u32 2131351028, %v447
        %v457 = vshrl.u32 2102212464, %v448
        %v458 = vor.u32 %v456, %v457
        %v459 = vshll.u32 2102212464, %v447
        %v460 = vshrl.u32 920167782, %v448
        %v461 = vor.u32 %v459, %v460
        %v462 = vshll.u32 920167782, %v447
        %v463 = vshrl.u32 1326507024, %v448
        %v464 = vor.u32 %v462, %v463
        %vm465 = vcmp.lt.s32.totalorder %v446, 1
        %vm466 = vcmp.lt.s32.totalorder %v446, 2
        %vm467 = vcmp.lt.s32.totalorder %v446, 3
        %vm468 = vcmp.lt.s32.totalorder %v446, 4
        %v469 = vsel %vm465, %v449, %v452
        %v470 = vsel %vm468, %v458, 2102212464
        %v471 = vsel %vm467, %v455, %v470
        %v472 = vsel %vm466, %v469, %v471
        %v473 = vsel %vm465, %v452, %v455
        %v474 = vsel %vm468, %v461, 920167782
        %v475 = vsel %vm467, %v458, %v474
        %v476 = vsel %vm466, %v473, %v475
        %v477 = vsel %vm465, %v455, %v458
        %v478 = vsel %vm468, %v464, 1326507024
        %v479 = vsel %vm467, %v461, %v478
        %v480 = vsel %vm466, %v477, %v479
        %v481 = vshll.u32 %v441, 8
        %v482 = vand.u32 %v481, 65535
        %v483 = vshrl.u32 %v481, 16
        %v484 = vand.u32 %v480, 65535
        %v485 = vshrl.u32 %v480, 16
        %v486 = vmul.u32 %v482, %v484
        %v487 = vmul.u32 %v482, %v485
        %v488 = vmul.u32 %v483, %v484
        %v489 = vmul.u32 %v483, %v485
        %v490 = vshll.u32 %v487, 16
        %v491 = vshrl.u32 %v487, 16
        %v492 = vshll.u32 %v488, 16
        %v493 = vshrl.u32 %v488, 16
        %vm494 = vc.u32 %v486, %v490
        %v495 = vsel %vm494, 1, 0
        %v496 = vadd.s32 %v486, %v490
        %v497 = vadd.s32 %v489, %v495
        %vm498 = vc.u32 %v496, %v492
        %v499 = vsel %vm498, 1, 0
        %v500 = vadd.s32 %v496, %v492
        %v501 = vadd.s32 %v497, %v499
        %v502 = vadd.s32 %v501, %v491
        %v503 = vadd.s32 %v502, %v493
        %v504 = vand.u32 %v481, 65535
        %v505 = vshrl.u32 %v481, 16
        %v506 = vand.u32 %v476, 65535
        %v507 = vshrl.u32 %v476, 16
        %v508 = vmul.u32 %v504, %v506
        %v509 = vmul.u32 %v504, %v507
        %v510 = vmul.u32 %v505, %v506
        %v511 = vmul.u32 %v505, %v507
        %v512 = vshll.u32 %v509, 16
        %v513 = vshrl.u32 %v509, 16
        %v514 = vshll.u32 %v510, 16
        %v515 = vshrl.u32 %v510, 16
        %vm516 = vc.u32 %v508, %v512
        %v517 = vsel %vm516, 1, 0
        %v518 = vadd.s32 %v508, %v512
        %v519 = vadd.s32 %v511, %v517
        %vm520 = vc.u32 %v518, %v514
        %v521 = vsel %vm520, 1, 0
        %v522 = vadd.s32 %v518, %v514
        %v523 = vadd.s32 %v519, %v521
        %v524 = vadd.s32 %v523, %v513
        %v525 = vadd.s32 %v524, %v515
        %v526 = vmul.u32 %v481, %v472
        %v527 = vadd.s32 %v503, %v522
        %vm528 = vc.u32 %v503, %v522
        %v529 = vadd.s32 %v525, 1
        %v530 = vsel %vm528, %v529, %v525
        %v531 = vadd.s32 %v526, %v530
        %v532 = vadd.s32 %v531, 536870912
        %v533 = vshrl.u32 %v532, 30
        %v534 = vshll.u32 %v533, 30
        %v535 = vsub.s32 %v531, %v534
        %vm536 = vcmp.lt.s32.totalorder %v535, 0
        %v537 = vsub.s32 0, %v535
        %v538 = vsel %vm536, %v537, %v535
        %v539 = vclz %v538
        %v540 = vsub.s32 %v539, 2
        %vm541 = vcmp.gt.s32.totalorder 0, %v540
        %v542 = vsel %vm541, 0, %v540
        %v543 = vsub.s32 32, %v542
        %v544 = vshll.u32 %v535, %v542
        %v545 = vshrl.u32 %v527, %v543
        %v546 = vor.u32 %v544, %v545
        %v547 = vsub.s32 4294967266, %v542
        %v548 = vadd.s32 %v547, 127
        %v549 = vshll.u32 %v548, 23
        %v550 = vor.u32 4788187, %v549
        %v551 = vand.u32 2147483647, %v550
        %v553 = vcvt.s32.f32 %v546
        %v554 = vmul.f32 %v553, %v551
        %v555 = vxor.u32 %v554, 2147483648
        %v556 = vsel %vm435, %v555, %v554
        %v557 = vsub.s32 4, %v533
        %v558 = vsel %vm435, %v557, %v533
        %v559 = vsel %vm434, %v278, %v556
        %v560 = vsel %vm434, 0, %v558
        %v561 = vmul.f32 %v559, %v559
        %v562 = vmul.f32 %v561, -0.001358992
        %v563 = vadd.f32 %v562, 0.041655596
        %v564 = vmul.f32 %v561, %v563
        %v565 = vadd.f32 %v564, -0.4999988
        %v566 = vmul.f32 %v561, %v565
        %v567 = vadd.f32 1.0, %v566
        %v568 = vmul.f32 %v559, %v559
        %v569 = vmul.f32 %v568, -0.00019511016
        %v570 = vadd.f32 %v569, 0.008332121
        %v571 = vmul.f32 %v568, %v570
        %v572 = vadd.f32 %v571, -0.16666654
        %v573 = vmul.f32 %v568, %v572
        %v574 = vadd.f32 %v573, 1.0
        %v575 = vmul.f32 %v574, %v559
        %vm576 = vweird.f32 %v278
        %v577 = vand.u32 %v560, 3
        %vm578 = vcmp.lt.s32.totalorder %v577, 2
        %vm579 = vcmp.eq.s32.totalorder %v577, 0
        %v580 = vxor.u32 %v575, 2147483648
        %v581 = vsel %vm579, %v567, %v580
        %vm582 = vcmp.eq.s32.totalorder %v577, 2
        %v583 = vxor.u32 %v567, 2147483648
        %v584 = vsel %vm582, %v583, %v575
        %v585 = vsel %vm578, %v581, %v584
        %v586 = vsel %vm576, nan, %v585
        %v587 = vand.u32 2147483647, %v277
        %vm588 = vcmp.le.f32.partialorder %v587, 0.7853982
        %vm589 = vcmp.lt.s32.totalorder %v277, 0
        %v590 = vand.u32 %v277, 2139095040
        %v591 = vshrl.u32 %v590, 23
        %v592 = vsub.s32 %v591, 127
        %v593 = vand.u32 2147483647, %v277
        %v594 = vand.u32 %v593, 8388607
        %v595 = vor.u32 %v594, 8388608
        %v596 = vsub.s32 0, %v595
        %v597 = vadd.s32 %v592, 1
        %vm598 = vcmp.gt.s32.totalorder %v597, 0
        %v599 = vsel %vm598, %v597, 0
        %v600 = vshrl.u32 %v599, 5
        %v601 = vand.u32 %v599, 31
        %v602 = vsub.s32 32, %v601
        %v603 = vshrl.u32 683565275, %v602
        %v604 = vshll.u32 683565275, %v601
        %v605 = vshrl.u32 2475754826, %v602
        %v606 = vor.u32 %v604, %v605
        %v607 = vshll.u32 2475754826, %v601
        %v608 = vshrl.u32 2131351028, %v602
        %v609 = vor.u32 %v607, %v608
        %v610 = vshll.u32 2131351028, %v601
        %v611 = vshrl.u32 2102212464, %v602
        %v612 = vor.u32 %v610, %v611
        %v613 = vshll.u32 2102212464, %v601
        %v614 = vshrl.u32 920167782, %v602
        %v615 = vor.u32 %v613, %v614
        %v616 = vshll.u32 920167782, %v601
        %v617 = vshrl.u32 1326507024, %v602
        %v618 = vor.u32 %v616, %v617
        %vm619 = vcmp.lt.s32.totalorder %v600, 1
        %vm620 = vcmp.lt.s32.totalorder %v600, 2
        %vm621 = vcmp.lt.s32.totalorder %v600, 3
        %vm622 = vcmp.lt.s32.totalorder %v600, 4
        %v623 = vsel %vm619, %v603, %v606
        %v624 = vsel %vm622, %v612, 2102212464
        %v625 = vsel %vm621, %v609, %v624
        %v626 = vsel %vm620, %v623, %v625
        %v627 = vsel %vm619, %v606, %v609
        %v628 = vsel %vm622, %v615, 920167782
        %v629 = vsel %vm621, %v612, %v628
        %v630 = vsel %vm620, %v627, %v629
        %v631 = vsel %vm619, %v609, %v612
        %v632 = vsel %vm622, %v618, 1326507024
        %v633 = vsel %vm621, %v615, %v632
        %v634 = vsel %vm620, %v631, %v633
        %v635 = vshll.u32 %v595, 8
        %v636 = vand.u32 %v635, 65535
        %v637 = vshrl.u32 %v635, 16
        %v638 = vand.u32 %v634, 65535
        %v639 = vshrl.u32 %v634, 16
        %v640 = vmul.u32 %v636, %v638
        %v641 = vmul.u32 %v636, %v639
        %v642 = vmul.u32 %v637, %v638
        %v643 = vmul.u32 %v637, %v639
        %v644 = vshll.u32 %v641, 16
        %v645 = vshrl.u32 %v641, 16
        %v646 = vshll.u32 %v642, 16
        %v647 = vshrl.u32 %v642, 16
        %vm648 = vc.u32 %v640, %v644
        %v649 = vsel %vm648, 1, 0
        %v650 = vadd.s32 %v640, %v644
        %v651 = vadd.s32 %v643, %v649
        %vm652 = vc.u32 %v650, %v646
        %v653 = vsel %vm652, 1, 0
        %v654 = vadd.s32 %v650, %v646
        %v655 = vadd.s32 %v651, %v653
        %v656 = vadd.s32 %v655, %v645
        %v657 = vadd.s32 %v656, %v647
        %v658 = vand.u32 %v635, 65535
        %v659 = vshrl.u32 %v635, 16
        %v660 = vand.u32 %v630, 65535
        %v661 = vshrl.u32 %v630, 16
        %v662 = vmul.u32 %v658, %v660
        %v663 = vmul.u32 %v658, %v661
        %v664 = vmul.u32 %v659, %v660
        %v665 = vmul.u32 %v659, %v661
        %v666 = vshll.u32 %v663, 16
        %v667 = vshrl.u32 %v663, 16
        %v668 = vshll.u32 %v664, 16
        %v669 = vshrl.u32 %v664, 16
        %vm670 = vc.u32 %v662, %v666
        %v671 = vsel %vm670, 1, 0
        %v672 = vadd.s32 %v662, %v666
        %v673 = vadd.s32 %v665, %v671
        %vm674 = vc.u32 %v672, %v668
        %v675 = vsel %vm674, 1, 0
        %v676 = vadd.s32 %v672, %v668
        %v677 = vadd.s32 %v673, %v675
        %v678 = vadd.s32 %v677, %v667
        %v679 = vadd.s32 %v678, %v669
        %v680 = vmul.u32 %v635, %v626
        %v681 = vadd.s32 %v657, %v676
        %vm682 = vc.u32 %v657, %v676
        %v683 = vadd.s32 %v679, 1
        %v684 = vsel %vm682, %v683, %v679
        %v685 = vadd.s32 %v680, %v684
        %v686 = vadd.s32 %v685, 536870912
        %v687 = vshrl.u32 %v686, 30
        %v688 = vshll.u32 %v687, 30
        %v689 = vsub.s32 %v685, %v688
        %vm690 = vcmp.lt.s32.totalorder %v689, 0
        %v691 = vsub.s32 0, %v689
        %v692 = vsel %vm690, %v691, %v689
        %v693 = vclz %v692
        %v694 = vsub.s32 %v693, 2
        %vm695 = vcmp.gt.s32.totalorder 0, %v694
        %v696 = vsel %vm695, 0, %v694
        %v697 = vsub.s32 32, %v696
        %v698 = vshll.u32 %v689, %v696
        %v699 = vshrl.u32 %v681, %v697
        %v700 = vor.u32 %v698, %v699
        %v701 = vsub.s32 4294967266, %v696
        %v702 = vadd.s32 %v701, 127
        %v703 = vshll.u32 %v702, 23
        %v704 = vor.u32 4788187, %v703
        %v705 = vand.u32 2147483647, %v704
        %v707 = vcvt.s32.f32 %v700
        %v708 = vmul.f32 %v707, %v705
        %v709 = vxor.u32 %v708, 2147483648
        %v710 = vsel %vm589, %v709, %v708
        %v711 = vsub.s32 4, %v687
        %v712 = vsel %vm589, %v711, %v687
        %v713 = vsel %vm588, %v277, %v710
        %v714 = vsel %vm588, 0, %v712
        %v715 = vmul.f32 %v713, %v713
        %v716 = vmul.f32 %v715, -0.001358992
        %v717 = vadd.f32 %v716, 0.041655596
        %v718 = vmul.f32 %v715, %v717
        %v719 = vadd.f32 %v718, -0.4999988
        %v720 = vmul.f32 %v715, %v719
        %v721 = vadd.f32 1.0, %v720
        %v722 = vmul.f32 %v713, %v713
        %v723 = vmul.f32 %v722, -0.00019511016
        %v724 = vadd.f32 %v723, 0.008332121
        %v725 = vmul.f32 %v722, %v724
        %v726 = vadd.f32 %v725, -0.16666654
        %v727 = vmul.f32 %v722, %v726
        %v728 = vadd.f32 %v727, 1.0
        %v729 = vmul.f32 %v728, %v713
        %vm730 = vweird.f32 %v277
        %v731 = vadd.s32 %v714, 3
        %v732 = vand.u32 %v731, 3
        %vm733 = vcmp.lt.s32.totalorder %v732, 2
        %vm734 = vcmp.eq.s32.totalorder %v732, 0
        %v735 = vxor.u32 %v729, 2147483648
        %v736 = vsel %vm734, %v721, %v735
        %vm737 = vcmp.eq.s32.totalorder %v732, 2
        %v738 = vxor.u32 %v721, 2147483648
        %v739 = vsel %vm737, %v738, %v729
        %v740 = vsel %vm733, %v736, %v739
        %v741 = vsel %vm730, nan, %v740
        %v742 = vand.u32 2147483647, %v278
        %vm743 = vcmp.le.f32.partialorder %v742, 0.7853982
        %vm744 = vcmp.lt.s32.totalorder %v278, 0
        %v745 = vand.u32 %v278, 2139095040
        %v746 = vshrl.u32 %v745, 23
        %v747 = vsub.s32 %v746, 127
        %v748 = vand.u32 2147483647, %v278
        %v749 = vand.u32 %v748, 8388607
        %v750 = vor.u32 %v749, 8388608
        %v751 = vsub.s32 0, %v750
        %v752 = vadd.s32 %v747, 1
        %vm753 = vcmp.gt.s32.totalorder %v752, 0
        %v754 = vsel %vm753, %v752, 0
        %v755 = vshrl.u32 %v754, 5
        %v756 = vand.u32 %v754, 31
        %v757 = vsub.s32 32, %v756
        %v758 = vshrl.u32 683565275, %v757
        %v759 = vshll.u32 683565275, %v756
        %v760 = vshrl.u32 2475754826, %v757
        %v761 = vor.u32 %v759, %v760
        %v762 = vshll.u32 2475754826, %v756
        %v763 = vshrl.u32 2131351028, %v757
        %v764 = vor.u32 %v762, %v763
        %v765 = vshll.u32 2131351028, %v756
        %v766 = vshrl.u32 2102212464, %v757
        %v767 = vor.u32 %v765, %v766
        %v768 = vshll.u32 2102212464, %v756
        %v769 = vshrl.u32 920167782, %v757
        %v770 = vor.u32 %v768, %v769
        %v771 = vshll.u32 920167782, %v756
        %v772 = vshrl.u32 1326507024, %v757
        %v773 = vor.u32 %v771, %v772
        %vm774 = vcmp.lt.s32.totalorder %v755, 1
        %vm775 = vcmp.lt.s32.totalorder %v755, 2
        %vm776 = vcmp.lt.s32.totalorder %v755, 3
        %vm777 = vcmp.lt.s32.totalorder %v755, 4
        %v778 = vsel %vm774, %v758, %v761
        %v779 = vsel %vm777, %v767, 2102212464
        %v780 = vsel %vm776, %v764, %v779
        %v781 = vsel %vm775, %v778, %v780
        %v782 = vsel %vm774, %v761, %v764
        %v783 = vsel %vm777, %v770, 920167782
        %v784 = vsel %vm776, %v767, %v783
        %v785 = vsel %vm775, %v782, %v784
        %v786 = vsel %vm774, %v764, %v767
        %v787 = vsel %vm777, %v773, 1326507024
        %v788 = vsel %vm776, %v770, %v787
        %v789 = vsel %vm775, %v786, %v788
        %v790 = vshll.u32 %v750, 8
        %v791 = vand.u32 %v790, 65535
        %v792 = vshrl.u32 %v790, 16
        %v793 = vand.u32 %v789, 65535
        %v794 = vshrl.u32 %v789, 16
        %v795 = vmul.u32 %v791, %v793
        %v796 = vmul.u32 %v791, %v794
        %v797 = vmul.u32 %v792, %v793
        %v798 = vmul.u32 %v792, %v794
        %v799 = vshll.u32 %v796, 16
        %v800 = vshrl.u32 %v796, 16
        %v801 = vshll.u32 %v797, 16
        %v802 = vshrl.u32 %v797, 16
        %vm803 = vc.u32 %v795, %v799
        %v804 = vsel %vm803, 1, 0
        %v805 = vadd.s32 %v795, %v799
        %v806 = vadd.s32 %v798, %v804
        %vm807 = vc.u32 %v805, %v801
        %v808 = vsel %vm807, 1, 0
        %v809 = vadd.s32 %v805, %v801
        %v810 = vadd.s32 %v806, %v808
        %v811 = vadd.s32 %v810, %v800
        %v812 = vadd.s32 %v811, %v802
        %v813 = vand.u32 %v790, 65535
        %v814 = vshrl.u32 %v790, 16
        %v815 = vand.u32 %v785, 65535
        %v816 = vshrl.u32 %v785, 16
        %v817 = vmul.u32 %v813, %v815
        %v818 = vmul.u32 %v813, %v816
        %v819 = vmul.u32 %v814, %v815
        %v820 = vmul.u32 %v814, %v816
        %v821 = vshll.u32 %v818, 16
        %v822 = vshrl.u32 %v818, 16
        %v823 = vshll.u32 %v819, 16
        %v824 = vshrl.u32 %v819, 16
        %vm825 = vc.u32 %v817, %v821
        %v826 = vsel %vm825, 1, 0
        %v827 = vadd.s32 %v817, %v821
        %v828 = vadd.s32 %v820, %v826
        %vm829 = vc.u32 %v827, %v823
        %v830 = vsel %vm829, 1, 0
        %v831 = vadd.s32 %v827, %v823
        %v832 = vadd.s32 %v828, %v830
        %v833 = vadd.s32 %v832, %v822
        %v834 = vadd.s32 %v833, %v824
        %v835 = vmul.u32 %v790, %v781
        %v836 = vadd.s32 %v812, %v831
        %vm837 = vc.u32 %v812, %v831
        %v838 = vadd.s32 %v834, 1
        %v839 = vsel %vm837, %v838, %v834
        %v840 = vadd.s32 %v835, %v839
        %v841 = vadd.s32 %v840, 536870912
        %v842 = vshrl.u32 %v841, 30
        %v843 = vshll.u32 %v842, 30
        %v844 = vsub.s32 %v840, %v843
        %vm845 = vcmp.lt.s32.totalorder %v844, 0
        %v846 = vsub.s32 0, %v844
        %v847 = vsel %vm845, %v846, %v844
        %v848 = vclz %v847
        %v849 = vsub.s32 %v848, 2
        %vm850 = vcmp.gt.s32.totalorder 0, %v849
        %v851 = vsel %vm850, 0, %v849
        %v852 = vsub.s32 32, %v851
        %v853 = vshll.u32 %v844, %v851
        %v854 = vshrl.u32 %v836, %v852
        %v855 = vor.u32 %v853, %v854
        %v856 = vsub.s32 4294967266, %v851
        %v857 = vadd.s32 %v856, 127
        %v858 = vshll.u32 %v857, 23
        %v859 = vor.u32 4788187, %v858
        %v860 = vand.u32 2147483647, %v859
        %v862 = vcvt.s32.f32 %v855
        %v863 = vmul.f32 %v862, %v860
        %v864 = vxor.u32 %v863, 2147483648
        %v865 = vsel %vm744, %v864, %v863
        %v866 = vsub.s32 4, %v842
        %v867 = vsel %vm744, %v866, %v842
        %v868 = vsel %vm743, %v278, %v865
        %v869 = vsel %vm743, 0, %v867
        %v870 = vmul.f32 %v868, %v868
        %v871 = vmul.f32 %v870, -0.001358992
        %v872 = vadd.f32 %v871, 0.041655596
        %v873 = vmul.f32 %v870, %v872
        %v874 = vadd.f32 %v873, -0.4999988
        %v875 = vmul.f32 %v870, %v874
        %v876 = vadd.f32 1.0, %v875
        %v877 = vmul.f32 %v868, %v868
        %v878 = vmul.f32 %v877, -0.00019511016
        %v879 = vadd.f32 %v878, 0.008332121
        %v880 = vmul.f32 %v877, %v879
        %v881 = vadd.f32 %v880, -0.16666654
        %v882 = vmul.f32 %v877, %v881
        %v883 = vadd.f32 %v882, 1.0
        %v884 = vmul.f32 %v883, %v868
        %vm885 = vweird.f32 %v278
        %v886 = vadd.s32 %v869, 3
        %v887 = vand.u32 %v886, 3
        %vm888 = vcmp.lt.s32.totalorder %v887, 2
        %vm889 = vcmp.eq.s32.totalorder %v887, 0
        %v890 = vxor.u32 %v884, 2147483648
        %v891 = vsel %vm889, %v876, %v890
        %vm892 = vcmp.eq.s32.totalorder %v887, 2
        %v893 = vxor.u32 %v876, 2147483648
        %v894 = vsel %vm892, %v893, %v884
        %v895 = vsel %vm888, %v891, %v894
        %v896 = vsel %vm885, nan, %v895
        %v897 = vsub.f32 %v741, %v432
        %v898 = vsub.f32 %v896, %v586
        %v899 = vlaneseq
        %v900 = vshrl.u32 %v899, 7
        %v901 = vand.u32 %v900, 1
        %v902 = vcvt.s32.f32 %v901
        %v903 = vperm.slane %v897, 0
        %v904 = vperm.slane %v898, 0
        %v905 = vmul.f32 %v902, %v903
        %v906 = vmul.f32 %v902, %v904
        %v907 = vperm.slane %v432, 0
        %v908 = vperm.slane %v586, 0
        %v909 = vadd.f32 %v907, %v905
        %v910 = vadd.f32 %v908, %v906
        %v911 = vshra.s32 %v900, 1
        %v912 = vand.u32 %v911, 1
        %v913 = vcvt.s32.f32 %v912
        %v914 = vperm.slane %v897, 1
        %v915 = vperm.slane %v898, 1
        %v916 = vmul.f32 %v913, %v914
        %v917 = vmul.f32 %v913, %v915
        %v918 = vperm.slane %v432, 1
        %v919 = vperm.slane %v586, 1
        %v920 = vadd.f32 %v918, %v916
        %v921 = vadd.f32 %v919, %v917
        %v922 = vmul.f32 %v909, %v920
        %v923 = vmul.f32 %v910, %v921
        %v924 = vshra.s32 %v900, 2
        %v925 = vand.u32 %v924, 1
        %v926 = vcvt.s32.f32 %v925
        %v927 = vperm.slane %v897, 2
        %v928 = vperm.slane %v898, 2
        %v929 = vmul.f32 %v926, %v927
        %v930 = vmul.f32 %v926, %v928
        %v931 = vperm.slane %v432, 2
        %v932 = vperm.slane %v586, 2
        %v933 = vadd.f32 %v931, %v929
        %v934 = vadd.f32 %v932, %v930
        %v935 = vmul.f32 %v922, %v933
        %v936 = vmul.f32 %v923, %v934
        %v937 = vld [vmem:[%s2] sm:$0xff]
        %v938 = vld [vmem:[%s2 + $0x8] sm:$0xff]
        %v940 = vsel %vm233, %v937, 0
        %v943 = vsel %vm233, %v938, 0
        %945 = vmatpush.msra.mxu0 0.0
        %946 = vmatpush.msra.mxu0 0.0
        %947 = vmatpush.msra.mxu0 0.0
        %948 = vmatpush.msra.mxu0 0.0
        %949 = vmatpush.msra.mxu0 0.0
        %950 = vmatpush.msra.mxu0 0.0
        %951 = vmatpush.msra.mxu0 0.0
        %952 = vmatpush.msra.mxu0 0.0
        %953 = vmatpush.msra.mxu0 0.0
        %954 = vmatpush.msra.mxu0 0.0
        %955 = vmatpush.msra.mxu0 0.0
        %956 = vmatpush.msra.mxu0 0.0
        %957 = vmatpush.msra.mxu0 0.0
        %958 = vmatpush.msra.mxu0 0.0
        %959 = vmatpush.msra.mxu0 0.0
        %960 = vmatpush.msra.mxu0 %v935
        %961 = vmatmul.f32.gmra.mxu0 %v940
        %v962 = vpop.f32.mrf.mxu0
        %v963 = vadd.f32 0.0, %v962
        %964 = vmatmul.f32.gmra.mxu0 %v943
        %v965 = vpop.f32.mrf.mxu0
        %v966 = vadd.f32 0.0, %v965
        %967 = vdwg.mxu0
        %968 = vmatpush.msra.mxu0 0.0
        %969 = vmatpush.msra.mxu0 0.0
        %970 = vmatpush.msra.mxu0 0.0
        %971 = vmatpush.msra.mxu0 0.0
        %972 = vmatpush.msra.mxu0 0.0
        %973 = vmatpush.msra.mxu0 0.0
        %974 = vmatpush.msra.mxu0 0.0
        %975 = vmatpush.msra.mxu0 0.0
        %976 = vmatpush.msra.mxu0 0.0
        %977 = vmatpush.msra.mxu0 0.0
        %978 = vmatpush.msra.mxu0 0.0
        %979 = vmatpush.msra.mxu0 0.0
        %980 = vmatpush.msra.mxu0 0.0
        %981 = vmatpush.msra.mxu0 0.0
        %982 = vmatpush.msra.mxu0 0.0
        %983 = vmatpush.msra.mxu0 %v936
        %984 = vmatmul.f32.gmra.mxu0 %v940
        %v985 = vpop.f32.mrf.mxu0
        %v986 = vadd.f32 0.0, %v985
        %987 = vmatmul.f32.gmra.mxu0 %v943
        %v988 = vpop.f32.mrf.mxu0
        %v989 = vadd.f32 0.0, %v988
        %990 = vdwg.mxu0
        %v991 = vmul.f32 %v963, %v963
        %v992 = vmul.f32 %v986, %v986
        %v993 = vmul.f32 %v966, %v966
        %v994 = vmul.f32 %v989, %v989
        %v995 = vadd.f32 %v991, %v993
        %v996 = vadd.f32 %v992, %v994
        %v997 = vld [vmem:[%s3] sm:$0xff]
        %v998 = vld [vmem:[%s3 + $0x8] sm:$0x3]
        %1000 = vset.pattern.permute.xlu0 0
        %1001 = vperm.xlu0 %1000, %v225
        %v1002 = vpop.permute.xlu0 %1001
        %1005 = vset.pattern.permute.xlu0 0
        %1006 = vperm.xlu0 %1005, %v226
        %v1007 = vpop.permute.xlu0 %1006
        %v1010 = vsel %vm233, %v997, 0
        %v1013 = vsel %vm233, %v998, 0
        %1015 = vmatpush.msra.mxu0 0.0
        %1016 = vmatpush.msra.mxu0 0.0
        %1017 = vmatpush.msra.mxu0 0.0
        %1018 = vmatpush.msra.mxu0 0.0
        %1019 = vmatpush.msra.mxu0 0.0
        %1020 = vmatpush.msra.mxu0 0.0
        %1021 = vmatpush.msra.mxu0 0.0
        %1022 = vmatpush.msra.mxu0 0.0
        %1023 = vmatpush.msra.mxu0 0.0
        %1024 = vmatpush.msra.mxu0 0.0
        %1025 = vmatpush.msra.mxu0 0.0
        %1026 = vmatpush.msra.mxu0 0.0
        %1027 = vmatpush.msra.mxu0 0.0
        %1028 = vmatpush.msra.mxu0 0.0
        %1029 = vmatpush.msra.mxu0 0.0
        %1030 = vmatpush.msra.mxu0 %v995
        %1031 = vmatmul.f32.gmra.mxu0 %v1010
        %v1032 = vpop.f32.mrf.mxu0
        %v1033 = vadd.f32 %v1002, %v1032
        %1034 = vmatmul.f32.gmra.mxu0 %v1013
        %v1035 = vpop.f32.mrf.mxu0
        %v1036 = vadd.f32 %v1007, %v1035
        %1037 = vdwg.mxu0
        %1038 = vmatpush.msra.mxu0 0.0
        %1039 = vmatpush.msra.mxu0 0.0
        %1040 = vmatpush.msra.mxu0 0.0
        %1041 = vmatpush.msra.mxu0 0.0
        %1042 = vmatpush.msra.mxu0 0.0
        %1043 = vmatpush.msra.mxu0 0.0
        %1044 = vmatpush.msra.mxu0 0.0
        %1045 = vmatpush.msra.mxu0 0.0
        %1046 = vmatpush.msra.mxu0 0.0
        %1047 = vmatpush.msra.mxu0 0.0
        %1048 = vmatpush.msra.mxu0 0.0
        %1049 = vmatpush.msra.mxu0 0.0
        %1050 = vmatpush.msra.mxu0 0.0
        %1051 = vmatpush.msra.mxu0 0.0
        %1052 = vmatpush.msra.mxu0 0.0
        %1053 = vmatpush.msra.mxu0 %v996
        %1054 = vmatmul.f32.gmra.mxu0 %v1010
        %v1055 = vpop.f32.mrf.mxu0
        %v1056 = vadd.f32 %v1002, %v1055
        %1057 = vmatmul.f32.gmra.mxu0 %v1013
        %v1058 = vpop.f32.mrf.mxu0
        %v1059 = vadd.f32 %v1007, %v1058
        %1060 = vdwg.mxu0
        %1061 = vst [vmem:[%s214] sm:$0xff] %v1033
        %1062 = vst [vmem:[%s214 + $0x8] sm:$0xff] %v1056
        %1063 = vst [vmem:[%s214 + $0x10] sm:$0x3] %v1036
        %1064 = vst [vmem:[%s214 + $0x18] sm:$0x3] %v1059
        %s1065 = sand.u32 %s134, 1
        %s1066 = sand.u32 %s134, 1
        %s1067 = smul.addr %s1066, 32
        %s1068 = scalar_lea.vmem [#allocation2], %s1067
        // Predicated region
        $region41: #{qfnn_forward.3} parent=39 // pred_check
          %p1069 = pneg %p144
        $region42: #{qfnn_forward.3} parent=39 // pred_check_branch
          %1071 = sbr.rel (%p1069) target = $region44
        $region43: #{qfnn_forward.3} parent=39 // pred_region
          %s1072 = smul.u32 2, %s16
          %s1073 = smul.addr %s1072, 8
          %s1074 = scalar_lea.vmem %s5, %s1073
          // Predicated region
          $region45: #{qfnn_forward.3} parent=43 // pred_check
            _
          $region46: #{qfnn_forward.3} parent=43 // pred_check_branch
            %1076 = sbr.rel (0) target = $region48
          $region47: #{qfnn_forward.3} parent=43 // pred_region
            // Predicated region
            $region49: #{qfnn_forward.3} parent=47 // pred_check
              _
            $region50: #{qfnn_forward.3} parent=47 // pred_check_branch
              %1078 = sbr.rel (0) target = $region52
            $region51: #{qfnn_forward.3} parent=47 // pred_region
              loop: start=0, step=1, limit=1
              $region53: #{qfnn_forward.3} parent=51 // loop_pre_header
                _
              $region54: #{qfnn_forward.3} parent=51 // loop_header
                %s1080 = sphi 0, %s1084
                %p1081 = scmp.ge.s32.totalorder %s1080, 1
                %s1085 = sphi %s1068, %s1068
                %s1086 = sphi %s1074, %s1074
              $region55: #{qfnn_forward.3} parent=51 // loop_header_branch
                %1083 = sbr.rel (%p1081) target = $region59
              $region56: #{qfnn_forward.3} parent=51 // loop_body
                %v1087 = vld [vmem:[%s1085] sm:$0xff]
                %1088 = vst [vmem:[%s1086] sm:$0xff] %v1087
                %v1089 = vld [vmem:[%s1085 + $0x8] sm:$0xff]
                %1090 = vst [vmem:[%s1086 + $0x8] sm:$0xff] %v1089
                %v1091 = vld [vmem:[%s1085 + $0x10] sm:$0xff]
                %1092 = vst [vmem:[%s1086 + $0x20] sm:$0xff] %v1091
                %v1093 = vld [vmem:[%s1085 + $0x18] sm:$0xff]
                %1094 = vst [vmem:[%s1086 + $0x28] sm:$0xff] %v1093
              $region57: #{qfnn_forward.3} parent=51 // loop_footer
                %s1084 = sadd.s32 1, %s1080
              $region58: #{qfnn_forward.3} parent=51 // loop_footer_branch
                %1079 = sbr.rel target = $region54
              $region59: #{qfnn_forward.3} parent=51 // loop_exit
                _
            $region52: #{qfnn_forward.3} parent=47 // pred_fallthru
              _
            // Predicated region
            $region60: #{qfnn_forward.3} parent=47 // pred_check
              _
            $region61: #{qfnn_forward.3} parent=47 // pred_check_branch
              %1096 = sbr.rel target = $region63
            $region62: #{qfnn_forward.3} parent=47 // pred_region
              _
            $region63: #{qfnn_forward.3} parent=47 // pred_fallthru
              _
          $region48: #{qfnn_forward.3} parent=43 // pred_fallthru
            _
          %1097 = vnop
        $region44: #{qfnn_forward.3} parent=39 // pred_fallthru
          _
      $region40: #{qfnn_forward.3} parent=5 // pred_fallthru
        _
      %p1098 = scmp.le.s32.totalorder 2, %s11
      // Predicated region
      $region64: #{qfnn_forward.3} parent=5 // pred_check
        %p1099 = pneg %p1098
      $region65: #{qfnn_forward.3} parent=5 // pred_check_branch
        %1101 = sbr.rel (%p1099) target = $region67
      $region66: #{qfnn_forward.3} parent=5 // pred_region
        %s1102 = ssub.s32 %s11, 2
        // Predicated region
        $region68: #{qfnn_forward.3} parent=66 // pred_check
          %p1103 = pneg %p150
        $region69: #{qfnn_forward.3} parent=66 // pred_check_branch
          %1105 = sbr.rel (%p1103) target = $region71
        $region70: #{qfnn_forward.3} parent=66 // pred_region
          %s1106 = sand.u32 %s135, 1
          %s1107 = sand.u32 %s135, 1
          %s1108 = smul.addr %s1107, 32
          %s1109 = scalar_lea.vmem [#allocation2], %s1108
        $region71: #{qfnn_forward.3} parent=66 // pred_fallthru
          _
      $region67: #{qfnn_forward.3} parent=5 // pred_fallthru
        _
    $region6: #{qfnn_forward.3} parent=1 // loop_footer
      %s15 = sadd.s32 1, %s11
    $region7: #{qfnn_forward.3} parent=1 // loop_footer_branch
      %10 = sbr.rel target = $region3
    $region8: #{qfnn_forward.3} parent=1 // loop_exit
      _

// kernel: qfnn_forward.2
$region0: #{qfnn_forward.2}
  #allocation0 [shape = 'u32[]', space=smem, size = 0x4, offset = 0x4, fixed_abs, tag = 'smem constant byte address 0x4 - core index']
  #allocation1 [shape = 'u32[72,128]{1,0:T(1,128)}', space=vmem, size = 0x9000, scoped, tag = 'internal scratch']
  %s0 = inlined_call_operand.vmem [shape: f32[10,512], index: 0, kind: input, shape index: {}]
  %s1 = inlined_call_operand.vmem [shape: f32[3,10], index: 1, kind: input, shape index: {}]
  %s2 = inlined_call_operand.vmem [shape: f32[3,8], index: 2, kind: input, shape index: {}]
  %s3 = inlined_call_operand.vmem [shape: f32[8,512], index: 3, kind: output, shape index: {0}]
  %s4 = inlined_call_operand.vmem [shape: f32[2,8,2], index: 4, kind: output, shape index: {1}]
  %5 = xla_tuple %s3, %s4
  %s6 = sld [smem:[#allocation0]]
  $region76: #{qfnn_forward.2} parent=0
    _
  %s8 = ssub.s32 1, %s6
  %s9 = scalar_select 0, %s8, %s6
  $region1: #{qfnn_forward.2} parent=0
    #allocation2 [shape = 'u8[32768]{0}', space=vmem, size = 0x8000, scoped, tag = 'input window, operand 0']
    loop: start=0, step=1, limit=4
    $region2: #{qfnn_forward.2} parent=1 // loop_pre_header
      _
    $region3: #{qfnn_forward.2} parent=1 // loop_header
      %s11 = sphi 0, %s15
      %p12 = scmp.ge.s32.totalorder %s11, 4
      %s21 = sphi 0, %s23
      %s24 = sphi 0, %s21
      %s25 = sphi 0, %s24
      %s41 = sphi 0, %s25
      %s45 = sphi 0, %s45
      %s47 = sphi 0, %s45
      %s48 = sphi 0, %s47
      %s62 = sphi 0, %s48
      %s66 = sphi 0, %s66
      %s68 = sphi 0, %s66
      %s69 = sphi 0, %s68
      %s83 = sphi 0, %s69
      %s89 = sphi 0, %s91
      %s92 = sphi 0, %s89
      %s93 = sphi 0, %s92
      %s109 = sphi 0, %s93
      %s115 = sphi 0, %s117
      %s118 = sphi 0, %s115
      %s119 = sphi 0, %s118
      %s135 = sphi 0, %s119
    $region4: #{qfnn_forward.2} parent=1 // loop_header_branch
      %14 = sbr.rel (%p12) target = $region8
    $region5: #{qfnn_forward.2} parent=1 // loop_body
      %s16 = ssub.s32 %s11, 1
      %s17 = ssub.s32 %s11, 2
      %s18 = sadd.s32 %s11, 1
      %s19 = ssub.s32 %s11, %s18
      %p20 = scmp.eq.s32.totalorder %s19, 0
      %s22 = sadd.s32 %s21, 1
      %s23 = scalar_select %p20, %s21, %s22
      %p26 = pneg %p20
      %p27 = scmp.eq.s32.totalorder %s11, 1
      %p28 = por %p26, %p27
      %p29 = scmp.ne.s32.totalorder %s21, %s24
      %p30 = scmp.eq.s32.totalorder %s11, 0
      %p31 = por %p29, %p30
      %p32 = scmp.ne.s32.totalorder %s21, %s24
      %p33 = scmp.eq.s32.totalorder %s16, 1
      %p34 = por %p32, %p33
      %p35 = scmp.ne.s32.totalorder %s24, %s25
      %p36 = scmp.eq.s32.totalorder %s16, 0
      %p37 = por %p35, %p36
      %p38 = scmp.ne.s32.totalorder %s24, %s25
      %p39 = scmp.eq.s32.totalorder %s17, 1
      %p40 = por %p38, %p39
      %p42 = scmp.ne.s32.totalorder %s25, %s41
      %p43 = scmp.eq.s32.totalorder %s17, 0
      %p44 = por %p42, %p43
      %s46 = sadd.s32 %s45, 1
      %p49 = scmp.eq.s32.totalorder %s11, 1
      %p50 = scmp.ne.s32.totalorder %s45, %s47
      %p51 = scmp.eq.s32.totalorder %s11, 0
      %p52 = por %p50, %p51
      %p53 = scmp.ne.s32.totalorder %s45, %s47
      %p54 = scmp.eq.s32.totalorder %s16, 1
      %p55 = por %p53, %p54
      %p56 = scmp.ne.s32.totalorder %s47, %s48
      %p57 = scmp.eq.s32.totalorder %s16, 0
      %p58 = por %p56, %p57
      %p59 = scmp.ne.s32.totalorder %s47, %s48
      %p60 = scmp.eq.s32.totalorder %s17, 1
      %p61 = por %p59, %p60
      %p63 = scmp.ne.s32.totalorder %s48, %s62
      %p64 = scmp.eq.s32.totalorder %s17, 0
      %p65 = por %p63, %p64
      %s67 = sadd.s32 %s66, 1
      %p70 = scmp.eq.s32.totalorder %s11, 1
      %p71 = scmp.ne.s32.totalorder %s66, %s68
      %p72 = scmp.eq.s32.totalorder %s11, 0
      %p73 = por %p71, %p72
      %p74 = scmp.ne.s32.totalorder %s66, %s68
      %p75 = scmp.eq.s32.totalorder %s16, 1
      %p76 = por %p74, %p75
      %p77 = scmp.ne.s32.totalorder %s68, %s69
      %p78 = scmp.eq.s32.totalorder %s16, 0
      %p79 = por %p77, %p78
      %p80 = scmp.ne.s32.totalorder %s68, %s69
      %p81 = scmp.eq.s32.totalorder %s17, 1
      %p82 = por %p80, %p81
      %p84 = scmp.ne.s32.totalorder %s69, %s83
      %p85 = scmp.eq.s32.totalorder %s17, 0
      %p86 = por %p84, %p85
      %s87 = ssub.s32 %s11, %s18
      %p88 = scmp.eq.s32.totalorder %s87, 0
      %s90 = sadd.s32 %s89, 1
      %s91 = scalar_select %p88, %s89, %s90
      %p94 = pneg %p88
      %p95 = scmp.eq.s32.totalorder %s11, 1
      %p96 = por %p94, %p95
      %p97 = scmp.ne.s32.totalorder %s89, %s92
      %p98 = scmp.eq.s32.totalorder %s11, 0
      %p99 = por %p97, %p98
      %p100 = scmp.ne.s32.totalorder %s89, %s92
      %p101 = scmp.eq.s32.totalorder %s16, 1
      %p102 = por %p100, %p101
      %p103 = scmp.ne.s32.totalorder %s92, %s93
      %p104 = scmp.eq.s32.totalorder %s16, 0
      %p105 = por %p103, %p104
      %p106 = scmp.ne.s32.totalorder %s92, %s93
      %p107 = scmp.eq.s32.totalorder %s17, 1
      %p108 = por %p106, %p107
      %p110 = scmp.ne.s32.totalorder %s93, %s109
      %p111 = scmp.eq.s32.totalorder %s17, 0
      %p112 = por %p110, %p111
      %s113 = ssub.s32 %s11, %s18
      %p114 = scmp.eq.s32.totalorder %s113, 0
      %s116 = sadd.s32 %s115, 1
      %s117 = scalar_select %p114, %s115, %s116
      %p120 = pneg %p114
      %p121 = scmp.eq.s32.totalorder %s11, 1
      %p122 = por %p120, %p121
      %p123 = scmp.ne.s32.totalorder %s115, %s118
      %p124 = scmp.eq.s32.totalorder %s11, 0
      %p125 = por %p123, %p124
      %p126 = scmp.ne.s32.totalorder %s115, %s118
      %p127 = scmp.eq.s32.totalorder %s16, 1
      %p128 = por %p126, %p127
      %p129 = scmp.ne.s32.totalorder %s118, %s119
      %p130 = scmp.eq.s32.totalorder %s16, 0
      %p131 = por %p129, %p130
      %p132 = scmp.ne.s32.totalorder %s118, %s119
      %p133 = scmp.eq.s32.totalorder %s17, 1
      %p134 = por %p132, %p133
      %p136 = scmp.ne.s32.totalorder %s119, %s135
      %p137 = scmp.eq.s32.totalorder %s17, 0
      %p138 = por %p136, %p137
      %p139 = scmp.le.s32.totalorder 1, %s11
      %p140 = scmp.lt.s32.totalorder %s11, 3
      %p141 = pnand %p139, %p140
      %p142 = pneg %p141
      // Predicated region
      $region9: #{qfnn_forward.2} parent=5 // pred_check
        _
      $region10: #{qfnn_forward.2} parent=5 // pred_check_branch
        %144 = sbr.rel (%p141) target = $region12
      $region11: #{qfnn_forward.2} parent=5 // pred_region
        %s145 = ssub.s32 %s11, 1
        // Predicated region
        $region13: #{qfnn_forward.2} parent=11 // pred_check
          %p146 = pneg %p58
        $region14: #{qfnn_forward.2} parent=11 // pred_check_branch
          %148 = sbr.rel (%p146) target = $region16
        $region15: #{qfnn_forward.2} parent=11 // pred_region
          _
        $region16: #{qfnn_forward.2} parent=11 // pred_fallthru
          _
        // Predicated region
        $region17: #{qfnn_forward.2} parent=11 // pred_check
          %p149 = pneg %p79
        $region18: #{qfnn_forward.2} parent=11 // pred_check_branch
          %151 = sbr.rel (%p149) target = $region20
        $region19: #{qfnn_forward.2} parent=11 // pred_region
          _
        $region20: #{qfnn_forward.2} parent=11 // pred_fallthru
          _
      $region12: #{qfnn_forward.2} parent=5 // pred_fallthru
        _
      %p152 = scmp.lt.s32.totalorder %s11, 2
      // Predicated region
      $region21: #{qfnn_forward.2} parent=5 // pred_check
        %p153 = pneg %p152
      $region22: #{qfnn_forward.2} parent=5 // pred_check_branch
        %155 = sbr.rel (%p153) target = $region24
      $region23: #{qfnn_forward.2} parent=5 // pred_region
        // Predicated region
        $region25: #{qfnn_forward.2} parent=23 // pred_check
          %p156 = pneg %p31
        $region26: #{qfnn_forward.2} parent=23 // pred_check_branch
          %158 = sbr.rel (%p156) target = $region28
        $region27: #{qfnn_forward.2} parent=23 // pred_region
          %s159 = sand.u32 %s21, 1
          %s160 = sand.u32 %s21, 1
          %s161 = smul.addr %s160, 32
          %s162 = scalar_lea.vmem [#allocation2], %s161
          %s163 = smul.u32 2, %s11
          %s164 = smul.addr %s163, 8
          %s165 = scalar_lea.vmem %s0, %s164
          // Predicated region
          $region29: #{qfnn_forward.2} parent=27 // pred_check
            _
          $region30: #{qfnn_forward.2} parent=27 // pred_check_branch
            %167 = sbr.rel (0) target = $region32
          $region31: #{qfnn_forward.2} parent=27 // pred_region
            // Predicated region
            $region33: #{qfnn_forward.2} parent=31 // pred_check
              _
            $region34: #{qfnn_forward.2} parent=31 // pred_check_branch
              %169 = sbr.rel (0) target = $region36
            $region35: #{qfnn_forward.2} parent=31 // pred_region
              loop: start=0, step=1, limit=1
              $region37: #{qfnn_forward.2} parent=35 // loop_pre_header
                _
              $region38: #{qfnn_forward.2} parent=35 // loop_header
                %s171 = sphi 0, %s175
                %p172 = scmp.ge.s32.totalorder %s171, 1
                %s176 = sphi %s165, %s165
                %s177 = sphi %s162, %s162
              $region39: #{qfnn_forward.2} parent=35 // loop_header_branch
                %174 = sbr.rel (%p172) target = $region43
              $region40: #{qfnn_forward.2} parent=35 // loop_body
                %v178 = vld [vmem:[%s176] sm:$0xff]
                %179 = vst [vmem:[%s177] sm:$0xff] %v178
                %v180 = vld [vmem:[%s176 + $0x8] sm:$0xff]
                %181 = vst [vmem:[%s177 + $0x8] sm:$0xff] %v180
                %v182 = vld [vmem:[%s176 + $0x20] sm:$0xff]
                %183 = vst [vmem:[%s177 + $0x10] sm:$0xff] %v182
                %v184 = vld [vmem:[%s176 + $0x28] sm:$0xff]
                %185 = vst [vmem:[%s177 + $0x18] sm:$0xff] %v184
              $region41: #{qfnn_forward.2} parent=35 // loop_footer
                %s175 = sadd.s32 1, %s171
              $region42: #{qfnn_forward.2} parent=35 // loop_footer_branch
                %170 = sbr.rel target = $region38
              $region43: #{qfnn_forward.2} parent=35 // loop_exit
                _
            $region36: #{qfnn_forward.2} parent=31 // pred_fallthru
              _
            // Predicated region
            $region44: #{qfnn_forward.2} parent=31 // pred_check
              _
            $region45: #{qfnn_forward.2} parent=31 // pred_check_branch
              %187 = sbr.rel target = $region47
            $region46: #{qfnn_forward.2} parent=31 // pred_region
              _
            $region47: #{qfnn_forward.2} parent=31 // pred_fallthru
              _
          $region32: #{qfnn_forward.2} parent=27 // pred_fallthru
            _
          %188 = vnop
        $region28: #{qfnn_forward.2} parent=23 // pred_fallthru
          _
      $region24: #{qfnn_forward.2} parent=5 // pred_fallthru
        _
      %p189 = scmp.le.s32.totalorder 1, %s11
      %p190 = scmp.lt.s32.totalorder %s11, 3
      %p191 = pnand %p189, %p190
      %p192 = pneg %p191
      // Predicated region
      $region48: #{qfnn_forward.2} parent=5 // pred_check
        _
      $region49: #{qfnn_forward.2} parent=5 // pred_check_branch
        %194 = sbr.rel (%p191) target = $region51
      $region50: #{qfnn_forward.2} parent=5 // pred_region
        %s195 = ssub.s32 %s11, 1
        %s196 = sand.u32 %s24, 1
        %s197 = sand.u32 %s24, 1
        %s198 = smul.addr %s197, 32
        %s199 = scalar_lea.vmem [#allocation2], %s198
        // Predicated region
        $region52: #{qfnn_forward.2} parent=50 // pred_check
          %p200 = pneg %p37
        $region53: #{qfnn_forward.2} parent=50 // pred_check_branch
          %202 = sbr.rel (%p200) target = $region55
        $region54: #{qfnn_forward.2} parent=50 // pred_region
          _
        $region55: #{qfnn_forward.2} parent=50 // pred_fallthru
          _
        %s203 = sand.u32 %s24, 1
        %s204 = sand.u32 %s24, 1
        %s205 = smul.addr %s204, 32
        %s206 = scalar_lea.vmem [#allocation2], %s205
        %p207 = pneg %p37
        %p208 = pneg %p34
        %p209 = pneg %p58
        %p210 = pneg %p55
        %p211 = pneg %p79
        %p212 = pneg %p76
        %p213 = pneg %p105
        %p214 = pneg %p102
        %s215 = smul.u32 2, %s16
        %p216 = scmp.lt.s32.totalorder %s215, 3
        %s217 = scalar_select %p216, %s215, 3
        %s218 = smul.addr %s217, 8
        %s219 = scalar_lea.vmem %s3, %s218
        %p220 = pneg %p131
        %p221 = pneg %p128
        %p222 = scmp.lt.s32.totalorder %s16, 1
        %s223 = scalar_select %p222, %s16, 1
        %s224 = smul.addr %s223, 8
        %s225 = scalar_lea.vmem %s4, %s224
        %s226 = smul.u32 2, %s16
        %s227 = smul.u32 2, %s16
        %p228 = scmp.lt.s32.totalorder %s227, 3
        %s229 = scalar_select %p228, %s227, 3
        %s230 = smul.addr %s229, 8
        %s231 = scalar_lea.vmem %s3, %s230
        %s232 = smul.u32 2, %s16
        %p233 = scmp.lt.s32.totalorder %s16, 1
        %s234 = scalar_select %p233, %s16, 1
        %s235 = smul.addr %s234, 8
        %s236 = scalar_lea.vmem %s4, %s235
        %v237 = vld [vmem:[%s199] sm:$0xff]
        %v238 = vld [vmem:[%s199 + $0x8] sm:$0xff]
        %v239 = vld [vmem:[%s199 + $0x10] sm:$0x3]
        %v240 = vld [vmem:[%s199 + $0x18] sm:$0x3]
        %v241 = vld [vmem:[%s2] sm:$0x7]
        %v242 = vld [vmem:[%s1] sm:$0x7]
        %244 = vset.pattern.permute.xlu0 0
        %245 = vperm.xlu0 %244, %v241
        %v246 = vpop.permute.xlu0 %245
        %vm248 = vcmask 80896
        %v250 = vsel %vm248, %v242, 0
        %vm252 = vcmask 1041408
        %v254 = vsel %vm252, %v239, 0
        %v257 = vsel %vm252, %v240, 0
        %259 = vmatpush.msra.mxu0 0.0
        %260 = vmatpush.msra.mxu0 0.0
        %261 = vmatpush.msra.mxu0 0.0
        %262 = vmatpush.msra.mxu0 0.0
        %263 = vmatpush.msra.mxu0 0.0
        %264 = vmatpush.msra.mxu0 0.0
        %265 = vmatpush.msra.mxu0 0.0
        %266 = vmatpush.msra.mxu0 0.0
        %267 = vmatpush.msra.mxu0 0.0
        %268 = vmatpush.msra.mxu0 0.0
        %269 = vmatpush.msra.mxu0 0.0
        %270 = vmatpush.msra.mxu0 0.0
        %271 = vmatpush.msra.mxu0 0.0
        %272 = vmatpush.msra.mxu0 0.0
        %273 = vmatpush.msra.mxu0 %v254
        %274 = vmatpush.msra.mxu0 %v237
        %275 = vmatmul.f32.gmra.mxu0 %v250
        %v276 = vpop.f32.mrf.mxu0
        %v277 = vadd.f32 %v246, %v276
        %278 = vdwg.mxu0
        %279 = vmatpush.msra.mxu0 0.0
        %280 = vmatpush.msra.mxu0 0.0
        %281 = vmatpush.msra.mxu0 0.0
        %282 = vmatpush.msra.mxu0 0.0
        %283 = vmatpush.msra.mxu0 0.0
        %284 = vmatpush.msra.mxu0 0.0
        %285 = vmatpush.msra.mxu0 0.0
        %286 = vmatpush.msra.mxu0 0.0
        %287 = vmatpush.msra.mxu0 0.0
        %288 = vmatpush.msra.mxu0 0.0
        %289 = vmatpush.msra.mxu0 0.0
        %290 = vmatpush.msra.mxu0 0.0
        %291 = vmatpush.msra.mxu0 0.0
        %292 = vmatpush.msra.mxu0 0.0
        %293 = vmatpush.msra.mxu0 %v257
        %294 = vmatpush.msra.mxu0 %v238
        %295 = vmatmul.f32.gmra.mxu0 %v250
        %v296 = vpop.f32.mrf.mxu0
        %v297 = vadd.f32 %v246, %v296
        %298 = vdwg.mxu0
        %vm299 = vcmask 1042432
        %v300 = vsel %vm299, %v277, 0.0
        %v301 = vrot.slane %v300, 4
        %v302 = vadd.f32 %v300, %v301
        %v303 = vrot.slane %v302, 2
        %v304 = vadd.f32 %v302, %v303
        %v305 = vrot.slane %v304, 1
        %v306 = vadd.f32 %v304, %v305
        %v307 = vsel %vm299, %v297, 0.0
        %v308 = vrot.slane %v307, 4
        %v309 = vadd.f32 %v307, %v308
        %v310 = vrot.slane %v309, 2
        %v311 = vadd.f32 %v309, %v310
        %v312 = vrot.slane %v311, 1
        %v313 = vadd.f32 %v311, %v312
        %v314 = vrcp.pop 3.0
        %v315 = vmul.f32 3.0, %v314
        %v316 = vsub.f32 1.0, %v315
        %v317 = vmul.f32 %v314, %v316
        %v318 = vadd.f32 %v314, %v317
        %vm319 = vweird.f32 %v314
        %v320 = vsel %vm319, %v314, %v318
        %v321 = vmul.f32 %v306, %v320
        %v322 = vmul.f32 %v313, %v320
        %v323 = vsub.f32 %v277, %v321
        %v324 = vsub.f32 %v297, %v322
        %v325 = vmul.f32 %v323, %v323
        %v326 = vmul.f32 %v324, %v324
        %v327 = vsel %vm299, %v325, 0.0
        %v328 = vrot.slane %v327, 4
        %v329 = vadd.f32 %v327, %v328
        %v330 = vrot.slane %v329, 2
        %v331 = vadd.f32 %v329, %v330
        %v332 = vrot.slane %v331, 1
        %v333 = vadd.f32 %v331, %v332
        %v334 = vsel %vm299, %v326, 0.0
        %v335 = vrot.slane %v334, 4
        %v336 = vadd.f32 %v334, %v335
        %v337 = vrot.slane %v336, 2
        %v338 = vadd.f32 %v336, %v337
        %v339 = vrot.slane %v338, 1
        %v340 = vadd.f32 %v338, %v339
        %v341 = vmul.f32 %v333, %v320
        %v342 = vmul.f32 %v340, %v320
        %v343 = vadd.f32 %v341, 1e-05
        %v344 = vadd.f32 %v342, 1e-05
        %v345 = vrsqrt.pop %v343
        %v346 = vmul.f32 %v345, %v343
        %v347 = vmul.f32 %v346, %v345
        %v348 = vmul.f32 0.5, %v347
        %v349 = vsub.f32 1.5, %v348
        %v350 = vmul.f32 %v345, %v349
        %vm351 = vweird.f32 %v343
        %vm352 = vweird.f32 %v345
        %vm353 = vmor %vm351, %vm352
        %v354 = vsel %vm353, %v345, %v350
        %v355 = vrsqrt.pop %v344
        %v356 = vmul.f32 %v355, %v344
        %v357 = vmul.f32 %v356, %v355
        %v358 = vmul.f32 0.5, %v357
        %v359 = vsub.f32 1.5, %v358
        %v360 = vmul.f32 %v355, %v359
        %vm361 = vweird.f32 %v344
        %vm362 = vweird.f32 %v355
        %vm363 = vmor %vm361, %vm362
        %v364 = vsel %vm363, %v355, %v360
        %v365 = vmul.f32 %v323, %v354
        %v366 = vmul.f32 %v324, %v364
        %367 = vset.pattern.permute.xlu0 1
        %368 = vperm.xlu0 %367, %v241
        %v369 = vpop.permute.xlu0 %368
        %v371 = vsub.f32 %v365, %v369
        %v372 = vsub.f32 %v366, %v369
        %v373 = vmul.f32 %v371, %v371
        %v374 = vmul.f32 %v372, %v372
        %v375 = vsub.f32 0.0, %v373
        %v376 = vsub.f32 0.0, %v374
        %377 = vset.pattern.permute.xlu0 3
        %378 = vperm.xlu0 %377, %v241
        %v379 = vpop.permute.xlu0 %378
        %v381 = vmul.f32 %v375, %v379
        %v382 = vmul.f32 %v376, %v379
        %v383 = vmul.f32 %v381, 1.442695
        %v384 = vpow.pop %v383
        %v385 = vmul.f32 %v382, 1.442695
        %v386 = vpow.pop %v385
        %v387 = vadd.f32 %v384, 1e-16
        %v388 = vadd.f32 %v386, 1e-16
        %v389 = vmax.f32 %v387, 0.0
        %v390 = vmax.f32 %v388, 0.0
        %v391 = vmin.f32 %v389, 0.99999
        %v392 = vmin.f32 %v390, 0.99999
        %393 = vset.pattern.permute.xlu0 2
        %394 = vperm.xlu0 %393, %v241
        %v395 = vpop.permute.xlu0 %394
        %v397 = vsub.f32 %v365, %v395
        %v398 = vsub.f32 %v366, %v395
        %v399 = vmul.f32 %v397, %v397
        %v400 = vmul.f32 %v398, %v398
        %v401 = vsub.f32 0.0, %v399
        %v402 = vsub.f32 0.0, %v400
        %403 = vset.pattern.permute.xlu0 4
        %404 = vperm.xlu0 %403, %v241
        %v405 = vpop.permute.xlu0 %404
        %v407 = vmul.f32 %v401, %v405
        %v408 = vmul.f32 %v402, %v405
        %v409 = vmul.f32 %v407, 1.442695
        %v410 = vpow.pop %v409
        %v411 = vmul.f32 %v408, 1.442695
        %v412 = vpow.pop %v411
        %v413 = vadd.f32 %v410, 1e-16
        %v414 = vadd.f32 %v412, 1e-16
        %v415 = vmax.f32 %v413, 0.0
        %v416 = vmax.f32 %v414, 0.0
        %v417 = vmin.f32 %v415, 0.99999
        %v418 = vmin.f32 %v416, 0.99999
        %v419 = vsub.f32 %v417, %v391
        %v420 = vsub.f32 %v418, %v392
        %v421 = vlaneseq
        %v422 = vshrl.u32 %v421, 7
        %v423 = vshra.s32 %v422, 2
        %v424 = vand.u32 %v423, 1
        %v425 = vcvt.s32.f32 %v424
        %v426 = vperm.slane %v419, 0
        %v427 = vperm.slane %v420, 0
        %v428 = vmul.f32 %v425, %v426
        %v429 = vmul.f32 %v425, %v427
        %v430 = vperm.slane %v391, 0
        %v431 = vperm.slane %v392, 0
        %v432 = vadd.f32 %v430, %v428
        %v433 = vadd.f32 %v431, %v429
        %v434 = vshra.s32 %v422, 1
        %v435 = vand.u32 %v434, 1
        %v436 = vcvt.s32.f32 %v435
        %v437 = vperm.slane %v419, 1
        %v438 = vperm.slane %v420, 1
        %v439 = vmul.f32 %v436, %v437
        %v440 = vmul.f32 %v436, %v438
        %v441 = vperm.slane %v391, 1
        %v442 = vperm.slane %v392, 1
        %v443 = vadd.f32 %v441, %v439
        %v444 = vadd.f32 %v442, %v440
        %v445 = vmul.f32 %v432, %v443
        %v446 = vmul.f32 %v433, %v444
        %v447 = vand.u32 %v422, 1
        %v448 = vcvt.s32.f32 %v447
        %v449 = vperm.slane %v419, 2
        %v450 = vperm.slane %v420, 2
        %v451 = vmul.f32 %v448, %v449
        %v452 = vmul.f32 %v448, %v450
        %v453 = vperm.slane %v391, 2
        %v454 = vperm.slane %v392, 2
        %v455 = vadd.f32 %v453, %v451
        %v456 = vadd.f32 %v454, %v452
        %v457 = vmul.f32 %v445, %v455
        %v458 = vmul.f32 %v446, %v456
        %v459 = vmul.f32 %v457, 2.0
        %v460 = vmul.f32 %v458, 2.0
        %v461 = vsub.f32 1.0, %v459
        %v462 = vsub.f32 1.0, %v460
        %463 = vst [vmem:[%s231] sm:$0xff] %v461
        %464 = vst [vmem:[%s231 + $0x8] sm:$0xff] %v462
        %v465 = vlaneseq
        %v466 = vand.u32 %v465, 127
        %v467 = vadd.s32 %v466, 128
        %s468 = smul.u32 %s16, 256
        %v469 = vstv %s468
        %v470 = vadd.s32 %v469, %v466
        %v471 = vadd.s32 %v469, %v467
        %vm472 = vcmp.lt.s32.totalorder %v470, 300
        %vm473 = vcmp.lt.s32.totalorder %v471, 300
        %v474 = vsel %vm472, 1, 0
        %v475 = vsel %vm473, 1, 0
        %vm476 = vcmp.eq.s32.totalorder %v474, 1
        %vm477 = vcmp.eq.s32.totalorder %v475, 1
        %v478 = vsel %vm476, %v461, 0.0
        %v479 = vsel %vm477, %v462, 0.0
        %v480 = vadd.f32 %v478, %v479
        %481 = vadd.xlane.f32.xlu0 %v480
        %v482 = vpop.xlane.xlu0 %481
        %v483 = vmul.f32 %v478, %v478
        %v484 = vmul.f32 %v479, %v479
        %v485 = vadd.f32 %v483, %v484
        %486 = vadd.xlane.f32.xlu0 %v485
        %v487 = vpop.xlane.xlu0 %486
        %vm488 = vcmask 7168
        %v489 = vsel %vm488, %v482, %v487
        %vm490 = vcmask 15360
        %491 = vst.msk [vmem:[%s236] sm:$0xff] %vm490, %v489
        %s492 = smul.u32 2, %s16
        %p493 = scmp.lt.s32.totalorder %s492, 3
        %s494 = scalar_select %p493, %s492, 3
        %s495 = smul.addr %s494, 8
        %s496 = scalar_lea.vmem %s3, %s495
        %p497 = scmp.lt.s32.totalorder %s16, 1
        %s498 = scalar_select %p497, %s16, 1
        %s499 = smul.addr %s498, 8
        %s500 = scalar_lea.vmem %s4, %s499
        // Predicated region
        $region56: #{qfnn_forward.2} parent=50 // pred_check
          %p501 = pneg %p102
        $region57: #{qfnn_forward.2} parent=50 // pred_check_branch
          %503 = sbr.rel (%p501) target = $region59
        $region58: #{qfnn_forward.2} parent=50 // pred_region
          %s504 = smul.u32 2, %s16
        $region59: #{qfnn_forward.2} parent=50 // pred_fallthru
          _
        // Predicated region
        $region60: #{qfnn_forward.2} parent=50 // pred_check
          %p505 = pneg %p128
        $region61: #{qfnn_forward.2} parent=50 // pred_check_branch
          %507 = sbr.rel (%p505) target = $region63
        $region62: #{qfnn_forward.2} parent=50 // pred_region
          _
        $region63: #{qfnn_forward.2} parent=50 // pred_fallthru
          _
      $region51: #{qfnn_forward.2} parent=5 // pred_fallthru
        _
      %p508 = scmp.le.s32.totalorder 2, %s11
      // Predicated region
      $region64: #{qfnn_forward.2} parent=5 // pred_check
        %p509 = pneg %p508
      $region65: #{qfnn_forward.2} parent=5 // pred_check_branch
        %511 = sbr.rel (%p509) target = $region67
      $region66: #{qfnn_forward.2} parent=5 // pred_region
        %s512 = ssub.s32 %s11, 2
        // Predicated region
        $region68: #{qfnn_forward.2} parent=66 // pred_check
          %p513 = pneg %p108
        $region69: #{qfnn_forward.2} parent=66 // pred_check_branch
          %515 = sbr.rel (%p513) target = $region71
        $region70: #{qfnn_forward.2} parent=66 // pred_region
          %s516 = smul.u32 2, %s17
          %p517 = scmp.lt.s32.totalorder %s516, 3
          %s518 = scalar_select %p517, %s516, 3
          %s519 = smul.addr %s518, 8
          %s520 = scalar_lea.vmem %s3, %s519
        $region71: #{qfnn_forward.2} parent=66 // pred_fallthru
          _
        // Predicated region
        $region72: #{qfnn_forward.2} parent=66 // pred_check
          %p521 = pneg %p134
        $region73: #{qfnn_forward.2} parent=66 // pred_check_branch
          %523 = sbr.rel (%p521) target = $region75
        $region74: #{qfnn_forward.2} parent=66 // pred_region
          %p524 = scmp.lt.s32.totalorder %s17, 1
          %s525 = scalar_select %p524, %s17, 1
          %s526 = smul.addr %s525, 8
          %s527 = scalar_lea.vmem %s4, %s526
        $region75: #{qfnn_forward.2} parent=66 // pred_fallthru
          _
      $region67: #{qfnn_forward.2} parent=5 // pred_fallthru
        _
    $region6: #{qfnn_forward.2} parent=1 // loop_footer
      %s15 = sadd.s32 1, %s11
    $region7: #{qfnn_forward.2} parent=1 // loop_footer_branch
      %10 = sbr.rel target = $region3
    $region8: #{qfnn_forward.2} parent=1 // loop_exit
      _

</llo_original>
